<compile_context>
chip_gen: v7x
topology: tpu7x:2x2x1
jax: 0.10.0
libtpu: 0.0.40
codegen_flags: <defaults>
</compile_context>

<pallas_src>
import functools

import jax
import jax.numpy as jnp
from jax import lax
from jax.experimental import pallas as pl
from jax.experimental.pallas import tpu as pltpu


def _round_up(x, m):
    return (x + m - 1) // m * m


# --------------------------------------------------------------------------
# Trilinear x2 upsample (PyTorch Upsample(scale=2, mode='trilinear',
# align_corners=False) semantics) -- XLA glue, runs in the input dtype.
# --------------------------------------------------------------------------
def _linear_upsample2x_axis(x, axis):
    s = x.shape[axis]
    xl = jnp.concatenate(
        [lax.slice_in_dim(x, 0, 1, axis=axis),
         lax.slice_in_dim(x, 0, s - 1, axis=axis)], axis=axis)
    xr = jnp.concatenate(
        [lax.slice_in_dim(x, 1, s, axis=axis),
         lax.slice_in_dim(x, s - 1, s, axis=axis)], axis=axis)
    even = 0.75 * x + 0.25 * xl   # out[2k]   = .25*x[k-1] + .75*x[k]   (clamped)
    odd = 0.75 * x + 0.25 * xr    # out[2k+1] = .75*x[k]   + .25*x[k+1] (clamped)
    out = jnp.stack([even, odd], axis=axis + 1)
    return out.reshape(x.shape[:axis] + (2 * s,) + x.shape[axis + 1:])


def trilinear_upsample2x(x_ncdhw):
    y = x_ncdhw
    for ax in (2, 3, 4):
        y = _linear_upsample2x_axis(y, ax)
    return y


# --------------------------------------------------------------------------
# Pallas kernel: Conv3d(3x3x3, pad=1, no bias) + GroupNorm + ReLU
# for one batch element (grid axis = batch), channels-first / lane-dense.
# --------------------------------------------------------------------------
def _up_conv_kernel(x_ref, w_ref, gamma_ref, beta_ref, mask_ref, o_ref,
                    slab_ref, *, num_groups, eps, cin, hp, wp, du, hu, wu):
    # x_ref:     (Cin, S_pad)   bf16  zero-padded upsampled volume, flattened
    # w_ref:     (Cout, K_pad)  bf16  rows ordered (kd, kh, kw, cin), zero cols
    # gamma/beta:(Cout, 1)      f32
    # mask_ref:  (1, L_pad)     f32   1.0 on real voxels, 0.0 on pad lanes
    # o_ref:     (Cout, L_pad)  f32   lane-dense output
    # slab_ref:  (K_pad, L_pad) bf16  im2col scratch
    cout, lp = o_ref.shape
    kpad = slab_ref.shape[0]
    ktaps = 27 * cin
    cg = cout // num_groups
    hpwp = hp * wp

    # Zero the K-padding rows (uninitialized VMEM must never feed the MXU).
    if ktaps < kpad:
        slab_ref[ktaps:, :] = jnp.zeros((kpad - ktaps, lp), slab_ref.dtype)

    # im2col: each tap's window over all output lanes is a contiguous,
    # in-bounds slice of the flattened zero-padded volume (the padded H/W
    # columns ride along as throwaway lanes and are masked later).
    for kd in range(3):
        for kh in range(3):
            for kw in range(3):
                t = (kd * 3 + kh) * 3 + kw
                off = kd * hpwp + kh * wp + kw
                slab_ref[t * cin:(t + 1) * cin, :] = x_ref[:, off:off + lp]

    # Single K=K_pad matmul on the MXU, f32 accumulation, lane-dense result.
    acc = jnp.dot(w_ref[...], slab_ref[...],
                  preferred_element_type=jnp.float32)          # (Cout, L_pad)

    # Zero the invalid lanes once (padded H/W columns + the L -> L_pad tail).
    mask = mask_ref[...] > 0.5                                  # (1, L_pad)
    acc = jnp.where(mask, acc, 0.0)

    # GroupNorm (one pass: sum & sum-of-squares) + folded affine + ReLU.
    inv_cnt = 1.0 / float(cg * du * hu * wu)                    # valid voxels
    for g in range(num_groups):
        grp = acc[g * cg:(g + 1) * cg, :]                       # (cg, L_pad)
        s1 = jnp.sum(grp)
        s2 = jnp.sum(grp * grp)
        mean = s1 * inv_cnt
        var = s2 * inv_cnt - mean * mean
        inv = lax.rsqrt(var + eps)
        scale = gamma_ref[g * cg:(g + 1) * cg, :] * inv             # (cg, 1)
        shift = beta_ref[g * cg:(g + 1) * cg, :] - mean * scale     # (cg, 1)
        o_ref[g * cg:(g + 1) * cg, :] = jnp.maximum(
            grp * scale + shift, 0.0).astype(o_ref.dtype)


def up_conv_forward(x_ncdhw, w_oidhw, gamma, beta, num_groups, eps=1e-5):
    """Full Up_Conv forward. x: (N, Cin, D, H, W) NCDHW, returns NCDHW f32."""
    # bf16 before the big wrapper passes (upsample / pad / flatten).
    xu = trilinear_upsample2x(x_ncdhw.astype(jnp.bfloat16))
    N, Cin, Du, Hu, Wu = xu.shape
    Cout = w_oidhw.shape[0]
    Dp, Hp, Wp = Du + 2, Hu + 2, Wu + 2
    S = Dp * Hp * Wp                          # flattened padded volume size
    L = Du * Hp * Wp                          # lane-dense output width (real)
    Lp = _round_up(L, 128)                    # lane-aligned output width
    max_off = 2 * Hp * Wp + 2 * Wp + 2        # largest im2col tap offset
    S_pad = _round_up(max(S, max_off + Lp), 128)
    Ktaps = 27 * Cin
    Kpad = _round_up(Ktaps, 128)

    # Conv zero-pad + flatten + flat-tail zero-extension (all zero-filled, so
    # every im2col slice in the kernel is in-bounds and NaN-free).
    xp = jnp.pad(xu, ((0, 0), (0, 0), (1, 1), (1, 1), (1, 1)))
    x2d = jnp.pad(xp.reshape(N, Cin, S), ((0, 0), (0, 0), (0, S_pad - S)))

    # (Cout, Cin, 3, 3, 3) -> (Cout, 27*Cin), rows (kd, kh, kw, cin); pad K.
    w_flat = jnp.transpose(w_oidhw, (0, 2, 3, 4, 1)).reshape(Cout, Ktaps)
    w_flat = jnp.pad(w_flat, ((0, 0), (0, Kpad - Ktaps))).astype(jnp.bfloat16)

    gamma2 = gamma.reshape(Cout, 1).astype(jnp.float32)
    beta2 = beta.reshape(Cout, 1).astype(jnp.float32)

    # Validity mask over the flattened (Du, Hp, Wp) + tail lane axis.
    q = jnp.arange(Lp, dtype=jnp.int32)
    r = q % (Hp * Wp)
    valid = (q < L) & (r // Wp < Hu) & (r % Wp < Wu)
    mask = valid.astype(jnp.float32).reshape(1, Lp)

    kernel = functools.partial(
        _up_conv_kernel, num_groups=num_groups, eps=eps,
        cin=Cin, hp=Hp, wp=Wp, du=Du, hu=Hu, wu=Wu)

    flops = 2 * N * Cout * Kpad * Lp
    bytes_accessed = (x2d.size * 2 + w_flat.size * 2 + mask.size * 4
                      + (gamma2.size + beta2.size) * 4 + N * Cout * Lp * 4)

    out = pl.pallas_call(
        kernel,
        out_shape=jax.ShapeDtypeStruct((N, Cout, Lp), jnp.float32),
        grid_spec=pltpu.PrefetchScalarGridSpec(
            num_scalar_prefetch=0,
            grid=(N,),
            in_specs=[
                pl.BlockSpec((None, Cin, S_pad), lambda n: (n, 0, 0)),
                pl.BlockSpec((Cout, Kpad), lambda n: (0, 0)),
                pl.BlockSpec((Cout, 1), lambda n: (0, 0)),
                pl.BlockSpec((Cout, 1), lambda n: (0, 0)),
                pl.BlockSpec((1, Lp), lambda n: (0, 0)),
            ],
            out_specs=pl.BlockSpec((None, Cout, Lp), lambda n: (n, 0, 0)),
            scratch_shapes=[pltpu.VMEM((Kpad, Lp), jnp.bfloat16)],
        ),
        compiler_params=pltpu.CompilerParams(
            dimension_semantics=("parallel",)),
        cost_estimate=pl.CostEstimate(
            flops=flops, transcendentals=0, bytes_accessed=bytes_accessed),
    )(x2d, w_flat, gamma2, beta2, mask)

    # TODO(synk): keep the lane-dense padded layout for the next layer instead
    #   of re-materializing NCDHW (this crop is an extra HBM pass).
    out = out[:, :, :L].reshape(N, Cout, Du, Hp, Wp)[:, :, :, :Hu, :Wu]
    return out


# --------------------------------------------------------------------------
# Pure-JAX reference (PyTorch-faithful, f32) for the sanity check.
# --------------------------------------------------------------------------
def reference_forward(x, w, gamma, beta, num_groups, eps=1e-5):
    xu = trilinear_upsample2x(x)
    y = lax.conv_general_dilated(
        xu, w, window_strides=(1, 1, 1),
        padding=((1, 1), (1, 1), (1, 1)),
        dimension_numbers=("NCDHW", "OIDHW", "NCDHW"),
        precision=lax.Precision.HIGHEST)
    n, c = y.shape[:2]
    yg = y.reshape(n, num_groups, c // num_groups, *y.shape[2:])
    mean = yg.mean(axis=(2, 3, 4, 5), keepdims=True)
    var = ((yg - mean) ** 2).mean(axis=(2, 3, 4, 5), keepdims=True)
    yn = ((yg - mean) / jnp.sqrt(var + eps)).reshape(y.shape)
    yn = yn * gamma[None, :, None, None, None] + beta[None, :, None, None, None]
    return jnp.maximum(yn, 0.0)


if __name__ == "__main__":
    # Up_Conv(input_ch=4, output_ch=8, group_num=2, dim=3)
    N, Cin, Cout, G = 2, 4, 8, 2
    D = H = W = 4  # input spatial; output spatial = 8 after x2 upsample

    key = jax.random.PRNGKey(0)
    kx, kw, kg, kb = jax.random.split(key, 4)
    x = jax.random.normal(kx, (N, Cin, D, H, W), jnp.float32)
    w = jax.random.normal(kw, (Cout, Cin, 3, 3, 3), jnp.float32) * 0.1
    gamma = 1.0 + 0.1 * jax.random.normal(kg, (Cout,), jnp.float32)
    beta = 0.1 * jax.random.normal(kb, (Cout,), jnp.float32)

    fwd = jax.jit(functools.partial(up_conv_forward, num_groups=G))
    out = jax.block_until_ready(fwd(x, w, gamma, beta))

    assert out.shape == (N, Cout, 2 * D, 2 * H, 2 * W), out.shape

    ref = reference_forward(x, w, gamma, beta, G)
    max_err = float(jnp.max(jnp.abs(out - ref)))
    # bf16 activations/weights on the MXU vs an f32-HIGHEST reference.
    assert max_err < 1e-1, f"max abs error too large: {max_err}"

    print("KERNEL_OK")
</pallas_src>

<mosaic_0001>
module attributes {stable_mosaic.version = 11 : i64} {
  func.func @_up_conv_kernel(%arg0: i32, %arg1: memref<1x4x1152xbf16, #tpu.memory_space<vmem>>, %arg2: memref<8x128xbf16, #tpu.memory_space<vmem>>, %arg3: memref<8x1xf32, #tpu.memory_space<vmem>>, %arg4: memref<8x1xf32, #tpu.memory_space<vmem>>, %arg5: memref<1x896xf32, #tpu.memory_space<vmem>>, %arg6: memref<1x8x896xf32, #tpu.memory_space<vmem>>, %arg7: memref<128x896xbf16, #tpu.memory_space<vmem>>) attributes {dimension_semantics = [#tpu.dimension_semantics<parallel>], iteration_bounds = array<i64: 2>, scalar_prefetch = 0 : i64, scratch_operands = 1 : i64, tpu.core_type = #tpu.core_type<tc>, window_params = [{transform_indices = @transform_0, window_bounds = array<i64: 1, 4, 1152>}, {pipeline_mode = #tpu.pipeline_mode<synchronous>, transform_indices = @transform_1, window_bounds = array<i64: 8, 128>}, {pipeline_mode = #tpu.pipeline_mode<synchronous>, transform_indices = @transform_2, window_bounds = array<i64: 8, 1>}, {pipeline_mode = #tpu.pipeline_mode<synchronous>, transform_indices = @transform_3, window_bounds = array<i64: 8, 1>}, {pipeline_mode = #tpu.pipeline_mode<synchronous>, transform_indices = @transform_4, window_bounds = array<i64: 1, 896>}, {transform_indices = @transform_5, window_bounds = array<i64: 1, 8, 896>}]} {
    %cst = arith.constant 0.000000e+00 : bf16
    %0 = vector.broadcast %cst : bf16 to vector<20x896xbf16>
    %c108 = arith.constant 108 : index
    %c0 = arith.constant 0 : index
    %1 = vector.load %arg7[%c108, %c0] : memref<128x896xbf16, #tpu.memory_space<vmem>>, vector<20x896xbf16>
    tpu.vector_store %arg7[%c108, %c0], %0 {strides = array<i32>} : memref<128x896xbf16, #tpu.memory_space<vmem>>, vector<20x896xbf16>,
    %c0_0 = arith.constant 0 : index
    %c0_1 = arith.constant 0 : index
    %c0_2 = arith.constant 0 : index
    %2 = vector.load %arg1[%c0_0, %c0_1, %c0_2] : memref<1x4x1152xbf16, #tpu.memory_space<vmem>>, vector<1x4x896xbf16>
    %3 = vector.shape_cast %2 : vector<1x4x896xbf16> to vector<4x896xbf16>
    %c0_3 = arith.constant 0 : index
    %c0_4 = arith.constant 0 : index
    %4 = vector.load %arg7[%c0_3, %c0_4] : memref<128x896xbf16, #tpu.memory_space<vmem>>, vector<4x896xbf16>
    tpu.vector_store %arg7[%c0_3, %c0_4], %3 {strides = array<i32>} : memref<128x896xbf16, #tpu.memory_space<vmem>>, vector<4x896xbf16>,
    %c0_5 = arith.constant 0 : index
    %c0_6 = arith.constant 0 : index
    %c1 = arith.constant 1 : index
    %5 = vector.load %arg1[%c0_5, %c0_6, %c1] : memref<1x4x1152xbf16, #tpu.memory_space<vmem>>, vector<1x4x896xbf16>
    %6 = vector.shape_cast %5 : vector<1x4x896xbf16> to vector<4x896xbf16>
    %c4 = arith.constant 4 : index
    %c0_7 = arith.constant 0 : index
    %7 = vector.load %arg7[%c4, %c0_7] : memref<128x896xbf16, #tpu.memory_space<vmem>>, vector<4x896xbf16>
    tpu.vector_store %arg7[%c4, %c0_7], %6 {strides = array<i32>} : memref<128x896xbf16, #tpu.memory_space<vmem>>, vector<4x896xbf16>,
    %c0_8 = arith.constant 0 : index
    %c0_9 = arith.constant 0 : index
    %c2 = arith.constant 2 : index
    %8 = vector.load %arg1[%c0_8, %c0_9, %c2] : memref<1x4x1152xbf16, #tpu.memory_space<vmem>>, vector<1x4x896xbf16>
    %9 = vector.shape_cast %8 : vector<1x4x896xbf16> to vector<4x896xbf16>
    %c8 = arith.constant 8 : index
    %c0_10 = arith.constant 0 : index
    %10 = vector.load %arg7[%c8, %c0_10] : memref<128x896xbf16, #tpu.memory_space<vmem>>, vector<4x896xbf16>
    tpu.vector_store %arg7[%c8, %c0_10], %9 {strides = array<i32>} : memref<128x896xbf16, #tpu.memory_space<vmem>>, vector<4x896xbf16>,
    %c0_11 = arith.constant 0 : index
    %c0_12 = arith.constant 0 : index
    %c10 = arith.constant 10 : index
    %11 = vector.load %arg1[%c0_11, %c0_12, %c10] : memref<1x4x1152xbf16, #tpu.memory_space<vmem>>, vector<1x4x896xbf16>
    %12 = vector.shape_cast %11 : vector<1x4x896xbf16> to vector<4x896xbf16>
    %c12 = arith.constant 12 : index
    %c0_13 = arith.constant 0 : index
    %13 = vector.load %arg7[%c12, %c0_13] : memref<128x896xbf16, #tpu.memory_space<vmem>>, vector<4x896xbf16>
    tpu.vector_store %arg7[%c12, %c0_13], %12 {strides = array<i32>} : memref<128x896xbf16, #tpu.memory_space<vmem>>, vector<4x896xbf16>,
    %c0_14 = arith.constant 0 : index
    %c0_15 = arith.constant 0 : index
    %c11 = arith.constant 11 : index
    %14 = vector.load %arg1[%c0_14, %c0_15, %c11] : memref<1x4x1152xbf16, #tpu.memory_space<vmem>>, vector<1x4x896xbf16>
    %15 = vector.shape_cast %14 : vector<1x4x896xbf16> to vector<4x896xbf16>
    %c16 = arith.constant 16 : index
    %c0_16 = arith.constant 0 : index
    %16 = vector.load %arg7[%c16, %c0_16] : memref<128x896xbf16, #tpu.memory_space<vmem>>, vector<4x896xbf16>
    tpu.vector_store %arg7[%c16, %c0_16], %15 {strides = array<i32>} : memref<128x896xbf16, #tpu.memory_space<vmem>>, vector<4x896xbf16>,
    %c0_17 = arith.constant 0 : index
    %c0_18 = arith.constant 0 : index
    %c12_19 = arith.constant 12 : index
    %17 = vector.load %arg1[%c0_17, %c0_18, %c12_19] : memref<1x4x1152xbf16, #tpu.memory_space<vmem>>, vector<1x4x896xbf16>
    %18 = vector.shape_cast %17 : vector<1x4x896xbf16> to vector<4x896xbf16>
    %c20 = arith.constant 20 : index
    %c0_20 = arith.constant 0 : index
    %19 = vector.load %arg7[%c20, %c0_20] : memref<128x896xbf16, #tpu.memory_space<vmem>>, vector<4x896xbf16>
    tpu.vector_store %arg7[%c20, %c0_20], %18 {strides = array<i32>} : memref<128x896xbf16, #tpu.memory_space<vmem>>, vector<4x896xbf16>,
    %c0_21 = arith.constant 0 : index
    %c0_22 = arith.constant 0 : index
    %c20_23 = arith.constant 20 : index
    %20 = vector.load %arg1[%c0_21, %c0_22, %c20_23] : memref<1x4x1152xbf16, #tpu.memory_space<vmem>>, vector<1x4x896xbf16>
    %21 = vector.shape_cast %20 : vector<1x4x896xbf16> to vector<4x896xbf16>
    %c24 = arith.constant 24 : index
    %c0_24 = arith.constant 0 : index
    %22 = vector.load %arg7[%c24, %c0_24] : memref<128x896xbf16, #tpu.memory_space<vmem>>, vector<4x896xbf16>
    tpu.vector_store %arg7[%c24, %c0_24], %21 {strides = array<i32>} : memref<128x896xbf16, #tpu.memory_space<vmem>>, vector<4x896xbf16>,
    %c0_25 = arith.constant 0 : index
    %c0_26 = arith.constant 0 : index
    %c21 = arith.constant 21 : index
    %23 = vector.load %arg1[%c0_25, %c0_26, %c21] : memref<1x4x1152xbf16, #tpu.memory_space<vmem>>, vector<1x4x896xbf16>
    %24 = vector.shape_cast %23 : vector<1x4x896xbf16> to vector<4x896xbf16>
    %c28 = arith.constant 28 : index
    %c0_27 = arith.constant 0 : index
    %25 = vector.load %arg7[%c28, %c0_27] : memref<128x896xbf16, #tpu.memory_space<vmem>>, vector<4x896xbf16>
    tpu.vector_store %arg7[%c28, %c0_27], %24 {strides = array<i32>} : memref<128x896xbf16, #tpu.memory_space<vmem>>, vector<4x896xbf16>,
    %c0_28 = arith.constant 0 : index
    %c0_29 = arith.constant 0 : index
    %c22 = arith.constant 22 : index
    %26 = vector.load %arg1[%c0_28, %c0_29, %c22] : memref<1x4x1152xbf16, #tpu.memory_space<vmem>>, vector<1x4x896xbf16>
    %27 = vector.shape_cast %26 : vector<1x4x896xbf16> to vector<4x896xbf16>
    %c32 = arith.constant 32 : index
    %c0_30 = arith.constant 0 : index
    %28 = vector.load %arg7[%c32, %c0_30] : memref<128x896xbf16, #tpu.memory_space<vmem>>, vector<4x896xbf16>
    tpu.vector_store %arg7[%c32, %c0_30], %27 {strides = array<i32>} : memref<128x896xbf16, #tpu.memory_space<vmem>>, vector<4x896xbf16>,
    %c0_31 = arith.constant 0 : index
    %c0_32 = arith.constant 0 : index
    %c100 = arith.constant 100 : index
    %29 = vector.load %arg1[%c0_31, %c0_32, %c100] : memref<1x4x1152xbf16, #tpu.memory_space<vmem>>, vector<1x4x896xbf16>
    %30 = vector.shape_cast %29 : vector<1x4x896xbf16> to vector<4x896xbf16>
    %c36 = arith.constant 36 : index
    %c0_33 = arith.constant 0 : index
    %31 = vector.load %arg7[%c36, %c0_33] : memref<128x896xbf16, #tpu.memory_space<vmem>>, vector<4x896xbf16>
    tpu.vector_store %arg7[%c36, %c0_33], %30 {strides = array<i32>} : memref<128x896xbf16, #tpu.memory_space<vmem>>, vector<4x896xbf16>,
    %c0_34 = arith.constant 0 : index
    %c0_35 = arith.constant 0 : index
    %c101 = arith.constant 101 : index
    %32 = vector.load %arg1[%c0_34, %c0_35, %c101] : memref<1x4x1152xbf16, #tpu.memory_space<vmem>>, vector<1x4x896xbf16>
    %33 = vector.shape_cast %32 : vector<1x4x896xbf16> to vector<4x896xbf16>
    %c40 = arith.constant 40 : index
    %c0_36 = arith.constant 0 : index
    %34 = vector.load %arg7[%c40, %c0_36] : memref<128x896xbf16, #tpu.memory_space<vmem>>, vector<4x896xbf16>
    tpu.vector_store %arg7[%c40, %c0_36], %33 {strides = array<i32>} : memref<128x896xbf16, #tpu.memory_space<vmem>>, vector<4x896xbf16>,
    %c0_37 = arith.constant 0 : index
    %c0_38 = arith.constant 0 : index
    %c102 = arith.constant 102 : index
    %35 = vector.load %arg1[%c0_37, %c0_38, %c102] : memref<1x4x1152xbf16, #tpu.memory_space<vmem>>, vector<1x4x896xbf16>
    %36 = vector.shape_cast %35 : vector<1x4x896xbf16> to vector<4x896xbf16>
    %c44 = arith.constant 44 : index
    %c0_39 = arith.constant 0 : index
    %37 = vector.load %arg7[%c44, %c0_39] : memref<128x896xbf16, #tpu.memory_space<vmem>>, vector<4x896xbf16>
    tpu.vector_store %arg7[%c44, %c0_39], %36 {strides = array<i32>} : memref<128x896xbf16, #tpu.memory_space<vmem>>, vector<4x896xbf16>,
    %c0_40 = arith.constant 0 : index
    %c0_41 = arith.constant 0 : index
    %c110 = arith.constant 110 : index
    %38 = vector.load %arg1[%c0_40, %c0_41, %c110] : memref<1x4x1152xbf16, #tpu.memory_space<vmem>>, vector<1x4x896xbf16>
    %39 = vector.shape_cast %38 : vector<1x4x896xbf16> to vector<4x896xbf16>
    %c48 = arith.constant 48 : index
    %c0_42 = arith.constant 0 : index
    %40 = vector.load %arg7[%c48, %c0_42] : memref<128x896xbf16, #tpu.memory_space<vmem>>, vector<4x896xbf16>
    tpu.vector_store %arg7[%c48, %c0_42], %39 {strides = array<i32>} : memref<128x896xbf16, #tpu.memory_space<vmem>>, vector<4x896xbf16>,
    %c0_43 = arith.constant 0 : index
    %c0_44 = arith.constant 0 : index
    %c111 = arith.constant 111 : index
    %41 = vector.load %arg1[%c0_43, %c0_44, %c111] : memref<1x4x1152xbf16, #tpu.memory_space<vmem>>, vector<1x4x896xbf16>
    %42 = vector.shape_cast %41 : vector<1x4x896xbf16> to vector<4x896xbf16>
    %c52 = arith.constant 52 : index
    %c0_45 = arith.constant 0 : index
    %43 = vector.load %arg7[%c52, %c0_45] : memref<128x896xbf16, #tpu.memory_space<vmem>>, vector<4x896xbf16>
    tpu.vector_store %arg7[%c52, %c0_45], %42 {strides = array<i32>} : memref<128x896xbf16, #tpu.memory_space<vmem>>, vector<4x896xbf16>,
    %c0_46 = arith.constant 0 : index
    %c0_47 = arith.constant 0 : index
    %c112 = arith.constant 112 : index
    %44 = vector.load %arg1[%c0_46, %c0_47, %c112] : memref<1x4x1152xbf16, #tpu.memory_space<vmem>>, vector<1x4x896xbf16>
    %45 = vector.shape_cast %44 : vector<1x4x896xbf16> to vector<4x896xbf16>
    %c56 = arith.constant 56 : index
    %c0_48 = arith.constant 0 : index
    %46 = vector.load %arg7[%c56, %c0_48] : memref<128x896xbf16, #tpu.memory_space<vmem>>, vector<4x896xbf16>
    tpu.vector_store %arg7[%c56, %c0_48], %45 {strides = array<i32>} : memref<128x896xbf16, #tpu.memory_space<vmem>>, vector<4x896xbf16>,
    %c0_49 = arith.constant 0 : index
    %c0_50 = arith.constant 0 : index
    %c120 = arith.constant 120 : index
    %47 = vector.load %arg1[%c0_49, %c0_50, %c120] : memref<1x4x1152xbf16, #tpu.memory_space<vmem>>, vector<1x4x896xbf16>
    %48 = vector.shape_cast %47 : vector<1x4x896xbf16> to vector<4x896xbf16>
    %c60 = arith.constant 60 : index
    %c0_51 = arith.constant 0 : index
    %49 = vector.load %arg7[%c60, %c0_51] : memref<128x896xbf16, #tpu.memory_space<vmem>>, vector<4x896xbf16>
    tpu.vector_store %arg7[%c60, %c0_51], %48 {strides = array<i32>} : memref<128x896xbf16, #tpu.memory_space<vmem>>, vector<4x896xbf16>,
    %c0_52 = arith.constant 0 : index
    %c0_53 = arith.constant 0 : index
    %c121 = arith.constant 121 : index
    %50 = vector.load %arg1[%c0_52, %c0_53, %c121] : memref<1x4x1152xbf16, #tpu.memory_space<vmem>>, vector<1x4x896xbf16>
    %51 = vector.shape_cast %50 : vector<1x4x896xbf16> to vector<4x896xbf16>
    %c64 = arith.constant 64 : index
    %c0_54 = arith.constant 0 : index
    %52 = vector.load %arg7[%c64, %c0_54] : memref<128x896xbf16, #tpu.memory_space<vmem>>, vector<4x896xbf16>
    tpu.vector_store %arg7[%c64, %c0_54], %51 {strides = array<i32>} : memref<128x896xbf16, #tpu.memory_space<vmem>>, vector<4x896xbf16>,
    %c0_55 = arith.constant 0 : index
    %c0_56 = arith.constant 0 : index
    %c122 = arith.constant 122 : index
    %53 = vector.load %arg1[%c0_55, %c0_56, %c122] : memref<1x4x1152xbf16, #tpu.memory_space<vmem>>, vector<1x4x896xbf16>
    %54 = vector.shape_cast %53 : vector<1x4x896xbf16> to vector<4x896xbf16>
    %c68 = arith.constant 68 : index
    %c0_57 = arith.constant 0 : index
    %55 = vector.load %arg7[%c68, %c0_57] : memref<128x896xbf16, #tpu.memory_space<vmem>>, vector<4x896xbf16>
    tpu.vector_store %arg7[%c68, %c0_57], %54 {strides = array<i32>} : memref<128x896xbf16, #tpu.memory_space<vmem>>, vector<4x896xbf16>,
    %c0_58 = arith.constant 0 : index
    %c0_59 = arith.constant 0 : index
    %c200 = arith.constant 200 : index
    %56 = vector.load %arg1[%c0_58, %c0_59, %c200] : memref<1x4x1152xbf16, #tpu.memory_space<vmem>>, vector<1x4x896xbf16>
    %57 = vector.shape_cast %56 : vector<1x4x896xbf16> to vector<4x896xbf16>
    %c72 = arith.constant 72 : index
    %c0_60 = arith.constant 0 : index
    %58 = vector.load %arg7[%c72, %c0_60] : memref<128x896xbf16, #tpu.memory_space<vmem>>, vector<4x896xbf16>
    tpu.vector_store %arg7[%c72, %c0_60], %57 {strides = array<i32>} : memref<128x896xbf16, #tpu.memory_space<vmem>>, vector<4x896xbf16>,
    %c0_61 = arith.constant 0 : index
    %c0_62 = arith.constant 0 : index
    %c201 = arith.constant 201 : index
    %59 = vector.load %arg1[%c0_61, %c0_62, %c201] : memref<1x4x1152xbf16, #tpu.memory_space<vmem>>, vector<1x4x896xbf16>
    %60 = vector.shape_cast %59 : vector<1x4x896xbf16> to vector<4x896xbf16>
    %c76 = arith.constant 76 : index
    %c0_63 = arith.constant 0 : index
    %61 = vector.load %arg7[%c76, %c0_63] : memref<128x896xbf16, #tpu.memory_space<vmem>>, vector<4x896xbf16>
    tpu.vector_store %arg7[%c76, %c0_63], %60 {strides = array<i32>} : memref<128x896xbf16, #tpu.memory_space<vmem>>, vector<4x896xbf16>,
    %c0_64 = arith.constant 0 : index
    %c0_65 = arith.constant 0 : index
    %c202 = arith.constant 202 : index
    %62 = vector.load %arg1[%c0_64, %c0_65, %c202] : memref<1x4x1152xbf16, #tpu.memory_space<vmem>>, vector<1x4x896xbf16>
    %63 = vector.shape_cast %62 : vector<1x4x896xbf16> to vector<4x896xbf16>
    %c80 = arith.constant 80 : index
    %c0_66 = arith.constant 0 : index
    %64 = vector.load %arg7[%c80, %c0_66] : memref<128x896xbf16, #tpu.memory_space<vmem>>, vector<4x896xbf16>
    tpu.vector_store %arg7[%c80, %c0_66], %63 {strides = array<i32>} : memref<128x896xbf16, #tpu.memory_space<vmem>>, vector<4x896xbf16>,
    %c0_67 = arith.constant 0 : index
    %c0_68 = arith.constant 0 : index
    %c210 = arith.constant 210 : index
    %65 = vector.load %arg1[%c0_67, %c0_68, %c210] : memref<1x4x1152xbf16, #tpu.memory_space<vmem>>, vector<1x4x896xbf16>
    %66 = vector.shape_cast %65 : vector<1x4x896xbf16> to vector<4x896xbf16>
    %c84 = arith.constant 84 : index
    %c0_69 = arith.constant 0 : index
    %67 = vector.load %arg7[%c84, %c0_69] : memref<128x896xbf16, #tpu.memory_space<vmem>>, vector<4x896xbf16>
    tpu.vector_store %arg7[%c84, %c0_69], %66 {strides = array<i32>} : memref<128x896xbf16, #tpu.memory_space<vmem>>, vector<4x896xbf16>,
    %c0_70 = arith.constant 0 : index
    %c0_71 = arith.constant 0 : index
    %c211 = arith.constant 211 : index
    %68 = vector.load %arg1[%c0_70, %c0_71, %c211] : memref<1x4x1152xbf16, #tpu.memory_space<vmem>>, vector<1x4x896xbf16>
    %69 = vector.shape_cast %68 : vector<1x4x896xbf16> to vector<4x896xbf16>
    %c88 = arith.constant 88 : index
    %c0_72 = arith.constant 0 : index
    %70 = vector.load %arg7[%c88, %c0_72] : memref<128x896xbf16, #tpu.memory_space<vmem>>, vector<4x896xbf16>
    tpu.vector_store %arg7[%c88, %c0_72], %69 {strides = array<i32>} : memref<128x896xbf16, #tpu.memory_space<vmem>>, vector<4x896xbf16>,
    %c0_73 = arith.constant 0 : index
    %c0_74 = arith.constant 0 : index
    %c212 = arith.constant 212 : index
    %71 = vector.load %arg1[%c0_73, %c0_74, %c212] : memref<1x4x1152xbf16, #tpu.memory_space<vmem>>, vector<1x4x896xbf16>
    %72 = vector.shape_cast %71 : vector<1x4x896xbf16> to vector<4x896xbf16>
    %c92 = arith.constant 92 : index
    %c0_75 = arith.constant 0 : index
    %73 = vector.load %arg7[%c92, %c0_75] : memref<128x896xbf16, #tpu.memory_space<vmem>>, vector<4x896xbf16>
    tpu.vector_store %arg7[%c92, %c0_75], %72 {strides = array<i32>} : memref<128x896xbf16, #tpu.memory_space<vmem>>, vector<4x896xbf16>,
    %c0_76 = arith.constant 0 : index
    %c0_77 = arith.constant 0 : index
    %c220 = arith.constant 220 : index
    %74 = vector.load %arg1[%c0_76, %c0_77, %c220] : memref<1x4x1152xbf16, #tpu.memory_space<vmem>>, vector<1x4x896xbf16>
    %75 = vector.shape_cast %74 : vector<1x4x896xbf16> to vector<4x896xbf16>
    %c96 = arith.constant 96 : index
    %c0_78 = arith.constant 0 : index
    %76 = vector.load %arg7[%c96, %c0_78] : memref<128x896xbf16, #tpu.memory_space<vmem>>, vector<4x896xbf16>
    tpu.vector_store %arg7[%c96, %c0_78], %75 {strides = array<i32>} : memref<128x896xbf16, #tpu.memory_space<vmem>>, vector<4x896xbf16>,
    %c0_79 = arith.constant 0 : index
    %c0_80 = arith.constant 0 : index
    %c221 = arith.constant 221 : index
    %77 = vector.load %arg1[%c0_79, %c0_80, %c221] : memref<1x4x1152xbf16, #tpu.memory_space<vmem>>, vector<1x4x896xbf16>
    %78 = vector.shape_cast %77 : vector<1x4x896xbf16> to vector<4x896xbf16>
    %c100_81 = arith.constant 100 : index
    %c0_82 = arith.constant 0 : index
    %79 = vector.load %arg7[%c100_81, %c0_82] : memref<128x896xbf16, #tpu.memory_space<vmem>>, vector<4x896xbf16>
    tpu.vector_store %arg7[%c100_81, %c0_82], %78 {strides = array<i32>} : memref<128x896xbf16, #tpu.memory_space<vmem>>, vector<4x896xbf16>,
    %c0_83 = arith.constant 0 : index
    %c0_84 = arith.constant 0 : index
    %c222 = arith.constant 222 : index
    %80 = vector.load %arg1[%c0_83, %c0_84, %c222] : memref<1x4x1152xbf16, #tpu.memory_space<vmem>>, vector<1x4x896xbf16>
    %81 = vector.shape_cast %80 : vector<1x4x896xbf16> to vector<4x896xbf16>
    %c104 = arith.constant 104 : index
    %c0_85 = arith.constant 0 : index
    %82 = vector.load %arg7[%c104, %c0_85] : memref<128x896xbf16, #tpu.memory_space<vmem>>, vector<4x896xbf16>
    tpu.vector_store %arg7[%c104, %c0_85], %81 {strides = array<i32>} : memref<128x896xbf16, #tpu.memory_space<vmem>>, vector<4x896xbf16>,
    %c0_86 = arith.constant 0 : index
    %c0_87 = arith.constant 0 : index
    %83 = vector.load %arg2[%c0_86, %c0_87] : memref<8x128xbf16, #tpu.memory_space<vmem>>, vector<8x128xbf16>
    %c0_88 = arith.constant 0 : index
    %c0_89 = arith.constant 0 : index
    %84 = vector.load %arg7[%c0_88, %c0_89] : memref<128x896xbf16, #tpu.memory_space<vmem>>, vector<128x896xbf16>
    %cst_90 = arith.constant dense<0.000000e+00> : vector<8x896xf32>
    %85 = tpu.matmul %83, %84, %cst_90 {dimension_numbers = #tpu.dot_dimension_numbers<[1], [0], [0], [1], [0, 0, 1, 1], [], []>} : vector<8x128xbf16>, vector<128x896xbf16>, vector<8x896xf32> -> vector<8x896xf32>
    %c0_91 = arith.constant 0 : index
    %c0_92 = arith.constant 0 : index
    %86 = vector.load %arg5[%c0_91, %c0_92] : memref<1x896xf32, #tpu.memory_space<vmem>>, vector<1x896xf32>
    %cst_93 = arith.constant 5.000000e-01 : f32
    %87 = vector.broadcast %cst_93 : f32 to vector<1x896xf32>
    %88 = arith.cmpf ogt, %86, %87 : vector<1x896xf32>
    %cst_94 = arith.constant 0.000000e+00 : f32
    %89 = vector.shape_cast %88 : vector<1x896xi1> to vector<1x896xi1>
    %90 = vector.broadcast %89 : vector<1x896xi1> to vector<8x896xi1>
    %91 = vector.broadcast %cst_94 : f32 to vector<8x896xf32>
    %92 = arith.select %90, %85, %91 : vector<8x896xi1>, vector<8x896xf32>
    %93 = vector.extract_strided_slice %92 {offsets = [0, 0], sizes = [4, 896], strides = [1, 1]} : vector<8x896xf32> to vector<4x896xf32>
    %94 = vector.shape_cast %93 : vector<4x896xf32> to vector<1x4x896xf32>
    %cst_95 = arith.constant dense<0.000000e+00> : vector<1xf32>
    %95 = vector.multi_reduction <add>, %94, %cst_95 [1, 2] : vector<1x4x896xf32> to vector<1xf32>
    %96 = vector.shape_cast %95 : vector<1xf32> to vector<1x1x1xf32>
    %97 = vector.extract %96[0, 0, 0] : f32 from vector<1x1x1xf32>
    %98 = arith.mulf %93, %93 : vector<4x896xf32>
    %99 = vector.shape_cast %98 : vector<4x896xf32> to vector<1x4x896xf32>
    %cst_96 = arith.constant dense<0.000000e+00> : vector<1xf32>
    %100 = vector.multi_reduction <add>, %99, %cst_96 [1, 2] : vector<1x4x896xf32> to vector<1xf32>
    %101 = vector.shape_cast %100 : vector<1xf32> to vector<1x1x1xf32>
    %102 = vector.extract %101[0, 0, 0] : f32 from vector<1x1x1xf32>
    %cst_97 = arith.constant 4.8828125E-4 : f32
    %103 = arith.mulf %97, %cst_97 : f32
    %cst_98 = arith.constant 4.8828125E-4 : f32
    %104 = arith.mulf %102, %cst_98 : f32
    %105 = arith.mulf %103, %103 : f32
    %106 = arith.subf %104, %105 : f32
    %cst_99 = arith.constant 9.99999974E-6 : f32
    %107 = arith.addf %106, %cst_99 : f32
    %108 = math.rsqrt %107 : f32
    %c0_100 = arith.constant 0 : index
    %c0_101 = arith.constant 0 : index
    %109 = vector.load %arg3[%c0_100, %c0_101] : memref<8x1xf32, #tpu.memory_space<vmem>>, vector<4x1xf32>
    %110 = vector.broadcast %108 : f32 to vector<4x1xf32>
    %111 = arith.mulf %109, %110 : vector<4x1xf32>
    %c0_102 = arith.constant 0 : index
    %c0_103 = arith.constant 0 : index
    %112 = vector.load %arg4[%c0_102, %c0_103] : memref<8x1xf32, #tpu.memory_space<vmem>>, vector<4x1xf32>
    %113 = vector.broadcast %103 : f32 to vector<4x1xf32>
    %114 = arith.mulf %113, %111 : vector<4x1xf32>
    %115 = arith.subf %112, %114 : vector<4x1xf32>
    %116 = vector.broadcast %111 : vector<4x1xf32> to vector<4x896xf32>
    %117 = arith.mulf %93, %116 : vector<4x896xf32>
    %118 = vector.broadcast %115 : vector<4x1xf32> to vector<4x896xf32>
    %119 = arith.addf %117, %118 : vector<4x896xf32>
    %cst_104 = arith.constant 0.000000e+00 : f32
    %120 = vector.broadcast %cst_104 : f32 to vector<4x896xf32>
    %121 = arith.maximumf %119, %120 : vector<4x896xf32>
    %c0_105 = arith.constant 0 : index
    %c0_106 = arith.constant 0 : index
    %c0_107 = arith.constant 0 : index
    %122 = vector.load %arg6[%c0_105, %c0_106, %c0_107] : memref<1x8x896xf32, #tpu.memory_space<vmem>>, vector<1x4x896xf32>
    %123 = vector.shape_cast %122 : vector<1x4x896xf32> to vector<4x896xf32>
    %124 = vector.shape_cast %121 : vector<4x896xf32> to vector<1x4x896xf32>
    tpu.vector_store %arg6[%c0_105, %c0_106, %c0_107], %124 {strides = array<i32>} : memref<1x8x896xf32, #tpu.memory_space<vmem>>, vector<1x4x896xf32>,
    %125 = vector.extract_strided_slice %92 {offsets = [4, 0], sizes = [4, 896], strides = [1, 1]} : vector<8x896xf32> to vector<4x896xf32>
    %126 = vector.shape_cast %125 : vector<4x896xf32> to vector<1x4x896xf32>
    %cst_108 = arith.constant dense<0.000000e+00> : vector<1xf32>
    %127 = vector.multi_reduction <add>, %126, %cst_108 [1, 2] : vector<1x4x896xf32> to vector<1xf32>
    %128 = vector.shape_cast %127 : vector<1xf32> to vector<1x1x1xf32>
    %129 = vector.extract %128[0, 0, 0] : f32 from vector<1x1x1xf32>
    %130 = arith.mulf %125, %125 : vector<4x896xf32>
    %131 = vector.shape_cast %130 : vector<4x896xf32> to vector<1x4x896xf32>
    %cst_109 = arith.constant dense<0.000000e+00> : vector<1xf32>
    %132 = vector.multi_reduction <add>, %131, %cst_109 [1, 2] : vector<1x4x896xf32> to vector<1xf32>
    %133 = vector.shape_cast %132 : vector<1xf32> to vector<1x1x1xf32>
    %134 = vector.extract %133[0, 0, 0] : f32 from vector<1x1x1xf32>
    %cst_110 = arith.constant 4.8828125E-4 : f32
    %135 = arith.mulf %129, %cst_110 : f32
    %cst_111 = arith.constant 4.8828125E-4 : f32
    %136 = arith.mulf %134, %cst_111 : f32
    %137 = arith.mulf %135, %135 : f32
    %138 = arith.subf %136, %137 : f32
    %cst_112 = arith.constant 9.99999974E-6 : f32
    %139 = arith.addf %138, %cst_112 : f32
    %140 = math.rsqrt %139 : f32
    %c4_113 = arith.constant 4 : index
    %c0_114 = arith.constant 0 : index
    %141 = vector.load %arg3[%c4_113, %c0_114] : memref<8x1xf32, #tpu.memory_space<vmem>>, vector<4x1xf32>
    %142 = vector.broadcast %140 : f32 to vector<4x1xf32>
    %143 = arith.mulf %141, %142 : vector<4x1xf32>
    %c4_115 = arith.constant 4 : index
    %c0_116 = arith.constant 0 : index
    %144 = vector.load %arg4[%c4_115, %c0_116] : memref<8x1xf32, #tpu.memory_space<vmem>>, vector<4x1xf32>
    %145 = vector.broadcast %135 : f32 to vector<4x1xf32>
    %146 = arith.mulf %145, %143 : vector<4x1xf32>
    %147 = arith.subf %144, %146 : vector<4x1xf32>
    %148 = vector.broadcast %143 : vector<4x1xf32> to vector<4x896xf32>
    %149 = arith.mulf %125, %148 : vector<4x896xf32>
    %150 = vector.broadcast %147 : vector<4x1xf32> to vector<4x896xf32>
    %151 = arith.addf %149, %150 : vector<4x896xf32>
    %cst_117 = arith.constant 0.000000e+00 : f32
    %152 = vector.broadcast %cst_117 : f32 to vector<4x896xf32>
    %153 = arith.maximumf %151, %152 : vector<4x896xf32>
    %c0_118 = arith.constant 0 : index
    %c4_119 = arith.constant 4 : index
    %c0_120 = arith.constant 0 : index
    %154 = vector.load %arg6[%c0_118, %c4_119, %c0_120] : memref<1x8x896xf32, #tpu.memory_space<vmem>>, vector<1x4x896xf32>
    %155 = vector.shape_cast %154 : vector<1x4x896xf32> to vector<4x896xf32>
    %156 = vector.shape_cast %153 : vector<4x896xf32> to vector<1x4x896xf32>
    tpu.vector_store %arg6[%c0_118, %c4_119, %c0_120], %156 {strides = array<i32>} : memref<1x8x896xf32, #tpu.memory_space<vmem>>, vector<1x4x896xf32>,
    return
  }
  func.func @transform_0(%arg0: i32) -> (i32, i32, i32) {
    %c0_i32 = arith.constant 0 : i32
    %c0_i32_0 = arith.constant 0 : i32
    %c0_i32_1 = arith.constant 0 : i32
    return %arg0, %c0_i32, %c0_i32_0 : i32, i32, i32
  }
  func.func @transform_1(%arg0: i32) -> (i32, i32) {
    %c0_i32 = arith.constant 0 : i32
    %c0_i32_0 = arith.constant 0 : i32
    %c0_i32_1 = arith.constant 0 : i32
    return %c0_i32, %c0_i32_0 : i32, i32
  }
  func.func @transform_2(%arg0: i32) -> (i32, i32) {
    %c0_i32 = arith.constant 0 : i32
    %c0_i32_0 = arith.constant 0 : i32
    %c0_i32_1 = arith.constant 0 : i32
    return %c0_i32, %c0_i32_0 : i32, i32
  }
  func.func @transform_3(%arg0: i32) -> (i32, i32) {
    %c0_i32 = arith.constant 0 : i32
    %c0_i32_0 = arith.constant 0 : i32
    %c0_i32_1 = arith.constant 0 : i32
    return %c0_i32, %c0_i32_0 : i32, i32
  }
  func.func @transform_4(%arg0: i32) -> (i32, i32) {
    %c0_i32 = arith.constant 0 : i32
    %c0_i32_0 = arith.constant 0 : i32
    %c0_i32_1 = arith.constant 0 : i32
    return %c0_i32, %c0_i32_0 : i32, i32
  }
  func.func @transform_5(%arg0: i32) -> (i32, i32, i32) {
    %c0_i32 = arith.constant 0 : i32
    %c0_i32_0 = arith.constant 0 : i32
    %c0_i32_1 = arith.constant 0 : i32
    return %arg0, %c0_i32, %c0_i32_0 : i32, i32, i32
  }
}

</mosaic_0001>

<llo_original>
// kernel: up_conv_forward.1
$region0: #{up_conv_forward.1}
  #allocation0 [shape = 'u32[]', space=smem, size = 0x4, offset = 0x4, fixed_abs, tag = 'smem constant byte address 0x4 - core index']
  #allocation1 [shape = 'u32[144,128]{1,0:T(1,128)}', space=vmem, size = 0x12000, scoped, tag = 'internal scratch']
  #allocation2 [shape = 'bf16[128,896]{1,0:T(16,128)(2,1)}', space=vmem, size = 0x38000, scoped, tag = 'scratch operand']
  %s0 = inlined_call_operand.vmem [shape: bf16[2,4,1152], index: 0, kind: input, shape index: {}]
  %s1 = inlined_call_operand.vmem [shape: bf16[8,128], index: 1, kind: input, shape index: {}]
  %s2 = inlined_call_operand.vmem [shape: f32[8,1], index: 2, kind: input, shape index: {}]
  %s3 = inlined_call_operand.vmem [shape: f32[8,1], index: 3, kind: input, shape index: {}]
  %s4 = inlined_call_operand.vmem [shape: f32[1,896], index: 4, kind: input, shape index: {}]
  %s5 = inlined_call_operand.vmem [shape: f32[2,8,896], index: 5, kind: output, shape index: {}]
  %s6 = sld [smem:[#allocation0]]
  $region53: #{up_conv_forward.1} parent=0
    _
  %s8 = ssub.s32 1, %s6
  %s9 = scalar_select 0, %s8, %s6
  loop: start=0, step=1, limit=4
  $region2: #{up_conv_forward.1} parent=0 // loop_pre_header
    _
  $region3: #{up_conv_forward.1} parent=0 // loop_header
    %s11 = sphi 0, %s15
    %p12 = scmp.ge.s32.totalorder %s11, 4
    %s21 = sphi 0, %s23
    %s24 = sphi 0, %s21
    %s25 = sphi 0, %s24
    %s41 = sphi 0, %s25
    %s45 = sphi 0, %s45
    %s47 = sphi 0, %s45
    %s48 = sphi 0, %s47
    %s62 = sphi 0, %s48
    %s66 = sphi 0, %s66
    %s68 = sphi 0, %s66
    %s69 = sphi 0, %s68
    %s83 = sphi 0, %s69
    %s87 = sphi 0, %s87
    %s89 = sphi 0, %s87
    %s90 = sphi 0, %s89
    %s104 = sphi 0, %s90
    %s108 = sphi 0, %s108
    %s110 = sphi 0, %s108
    %s111 = sphi 0, %s110
    %s125 = sphi 0, %s111
    %s131 = sphi 0, %s133
    %s134 = sphi 0, %s131
    %s135 = sphi 0, %s134
    %s151 = sphi 0, %s135
  $region4: #{up_conv_forward.1} parent=0 // loop_header_branch
    %14 = sbr.rel (%p12) target = $region8
  $region5: #{up_conv_forward.1} parent=0 // loop_body
    %s16 = ssub.s32 %s11, 1
    %s17 = ssub.s32 %s11, 2
    %s18 = sadd.s32 %s11, 1
    %s19 = ssub.s32 %s11, %s18
    %p20 = scmp.eq.s32.totalorder %s19, 0
    %s22 = sadd.s32 %s21, 1
    %s23 = scalar_select %p20, %s21, %s22
    %p26 = pneg %p20
    %p27 = scmp.eq.s32.totalorder %s11, 1
    %p28 = por %p26, %p27
    %p29 = scmp.ne.s32.totalorder %s21, %s24
    %p30 = scmp.eq.s32.totalorder %s11, 0
    %p31 = por %p29, %p30
    %p32 = scmp.ne.s32.totalorder %s21, %s24
    %p33 = scmp.eq.s32.totalorder %s16, 1
    %p34 = por %p32, %p33
    %p35 = scmp.ne.s32.totalorder %s24, %s25
    %p36 = scmp.eq.s32.totalorder %s16, 0
    %p37 = por %p35, %p36
    %p38 = scmp.ne.s32.totalorder %s24, %s25
    %p39 = scmp.eq.s32.totalorder %s17, 1
    %p40 = por %p38, %p39
    %p42 = scmp.ne.s32.totalorder %s25, %s41
    %p43 = scmp.eq.s32.totalorder %s17, 0
    %p44 = por %p42, %p43
    %s46 = sadd.s32 %s45, 1
    %p49 = scmp.eq.s32.totalorder %s11, 1
    %p50 = scmp.ne.s32.totalorder %s45, %s47
    %p51 = scmp.eq.s32.totalorder %s11, 0
    %p52 = por %p50, %p51
    %p53 = scmp.ne.s32.totalorder %s45, %s47
    %p54 = scmp.eq.s32.totalorder %s16, 1
    %p55 = por %p53, %p54
    %p56 = scmp.ne.s32.totalorder %s47, %s48
    %p57 = scmp.eq.s32.totalorder %s16, 0
    %p58 = por %p56, %p57
    %p59 = scmp.ne.s32.totalorder %s47, %s48
    %p60 = scmp.eq.s32.totalorder %s17, 1
    %p61 = por %p59, %p60
    %p63 = scmp.ne.s32.totalorder %s48, %s62
    %p64 = scmp.eq.s32.totalorder %s17, 0
    %p65 = por %p63, %p64
    %s67 = sadd.s32 %s66, 1
    %p70 = scmp.eq.s32.totalorder %s11, 1
    %p71 = scmp.ne.s32.totalorder %s66, %s68
    %p72 = scmp.eq.s32.totalorder %s11, 0
    %p73 = por %p71, %p72
    %p74 = scmp.ne.s32.totalorder %s66, %s68
    %p75 = scmp.eq.s32.totalorder %s16, 1
    %p76 = por %p74, %p75
    %p77 = scmp.ne.s32.totalorder %s68, %s69
    %p78 = scmp.eq.s32.totalorder %s16, 0
    %p79 = por %p77, %p78
    %p80 = scmp.ne.s32.totalorder %s68, %s69
    %p81 = scmp.eq.s32.totalorder %s17, 1
    %p82 = por %p80, %p81
    %p84 = scmp.ne.s32.totalorder %s69, %s83
    %p85 = scmp.eq.s32.totalorder %s17, 0
    %p86 = por %p84, %p85
    %s88 = sadd.s32 %s87, 1
    %p91 = scmp.eq.s32.totalorder %s11, 1
    %p92 = scmp.ne.s32.totalorder %s87, %s89
    %p93 = scmp.eq.s32.totalorder %s11, 0
    %p94 = por %p92, %p93
    %p95 = scmp.ne.s32.totalorder %s87, %s89
    %p96 = scmp.eq.s32.totalorder %s16, 1
    %p97 = por %p95, %p96
    %p98 = scmp.ne.s32.totalorder %s89, %s90
    %p99 = scmp.eq.s32.totalorder %s16, 0
    %p100 = por %p98, %p99
    %p101 = scmp.ne.s32.totalorder %s89, %s90
    %p102 = scmp.eq.s32.totalorder %s17, 1
    %p103 = por %p101, %p102
    %p105 = scmp.ne.s32.totalorder %s90, %s104
    %p106 = scmp.eq.s32.totalorder %s17, 0
    %p107 = por %p105, %p106
    %s109 = sadd.s32 %s108, 1
    %p112 = scmp.eq.s32.totalorder %s11, 1
    %p113 = scmp.ne.s32.totalorder %s108, %s110
    %p114 = scmp.eq.s32.totalorder %s11, 0
    %p115 = por %p113, %p114
    %p116 = scmp.ne.s32.totalorder %s108, %s110
    %p117 = scmp.eq.s32.totalorder %s16, 1
    %p118 = por %p116, %p117
    %p119 = scmp.ne.s32.totalorder %s110, %s111
    %p120 = scmp.eq.s32.totalorder %s16, 0
    %p121 = por %p119, %p120
    %p122 = scmp.ne.s32.totalorder %s110, %s111
    %p123 = scmp.eq.s32.totalorder %s17, 1
    %p124 = por %p122, %p123
    %p126 = scmp.ne.s32.totalorder %s111, %s125
    %p127 = scmp.eq.s32.totalorder %s17, 0
    %p128 = por %p126, %p127
    %s129 = ssub.s32 %s11, %s18
    %p130 = scmp.eq.s32.totalorder %s129, 0
    %s132 = sadd.s32 %s131, 1
    %s133 = scalar_select %p130, %s131, %s132
    %p136 = pneg %p130
    %p137 = scmp.eq.s32.totalorder %s11, 1
    %p138 = por %p136, %p137
    %p139 = scmp.ne.s32.totalorder %s131, %s134
    %p140 = scmp.eq.s32.totalorder %s11, 0
    %p141 = por %p139, %p140
    %p142 = scmp.ne.s32.totalorder %s131, %s134
    %p143 = scmp.eq.s32.totalorder %s16, 1
    %p144 = por %p142, %p143
    %p145 = scmp.ne.s32.totalorder %s134, %s135
    %p146 = scmp.eq.s32.totalorder %s16, 0
    %p147 = por %p145, %p146
    %p148 = scmp.ne.s32.totalorder %s134, %s135
    %p149 = scmp.eq.s32.totalorder %s17, 1
    %p150 = por %p148, %p149
    %p152 = scmp.ne.s32.totalorder %s135, %s151
    %p153 = scmp.eq.s32.totalorder %s17, 0
    %p154 = por %p152, %p153
    %p155 = scmp.le.s32.totalorder 1, %s11
    %p156 = scmp.lt.s32.totalorder %s11, 3
    %p157 = pnand %p155, %p156
    %p158 = pneg %p157
    // Predicated region
    $region9: #{up_conv_forward.1} parent=5 // pred_check
      _
    $region10: #{up_conv_forward.1} parent=5 // pred_check_branch
      %160 = sbr.rel (%p157) target = $region12
    $region11: #{up_conv_forward.1} parent=5 // pred_region
      %s161 = ssub.s32 %s11, 1
      // Predicated region
      $region13: #{up_conv_forward.1} parent=11 // pred_check
        %p162 = pneg %p58
      $region14: #{up_conv_forward.1} parent=11 // pred_check_branch
        %164 = sbr.rel (%p162) target = $region16
      $region15: #{up_conv_forward.1} parent=11 // pred_region
        _
      $region16: #{up_conv_forward.1} parent=11 // pred_fallthru
        _
      // Predicated region
      $region17: #{up_conv_forward.1} parent=11 // pred_check
        %p165 = pneg %p79
      $region18: #{up_conv_forward.1} parent=11 // pred_check_branch
        %167 = sbr.rel (%p165) target = $region20
      $region19: #{up_conv_forward.1} parent=11 // pred_region
        _
      $region20: #{up_conv_forward.1} parent=11 // pred_fallthru
        _
      // Predicated region
      $region21: #{up_conv_forward.1} parent=11 // pred_check
        %p168 = pneg %p100
      $region22: #{up_conv_forward.1} parent=11 // pred_check_branch
        %170 = sbr.rel (%p168) target = $region24
      $region23: #{up_conv_forward.1} parent=11 // pred_region
        _
      $region24: #{up_conv_forward.1} parent=11 // pred_fallthru
        _
      // Predicated region
      $region25: #{up_conv_forward.1} parent=11 // pred_check
        %p171 = pneg %p121
      $region26: #{up_conv_forward.1} parent=11 // pred_check_branch
        %173 = sbr.rel (%p171) target = $region28
      $region27: #{up_conv_forward.1} parent=11 // pred_region
        _
      $region28: #{up_conv_forward.1} parent=11 // pred_fallthru
        _
    $region12: #{up_conv_forward.1} parent=5 // pred_fallthru
      _
    %p174 = scmp.lt.s32.totalorder %s11, 2
    // Predicated region
    $region29: #{up_conv_forward.1} parent=5 // pred_check
      %p175 = pneg %p174
    $region30: #{up_conv_forward.1} parent=5 // pred_check_branch
      %177 = sbr.rel (%p175) target = $region32
    $region31: #{up_conv_forward.1} parent=5 // pred_region
      // Predicated region
      $region33: #{up_conv_forward.1} parent=31 // pred_check
        %p178 = pneg %p31
      $region34: #{up_conv_forward.1} parent=31 // pred_check_branch
        %180 = sbr.rel (%p178) target = $region36
      $region35: #{up_conv_forward.1} parent=31 // pred_region
        %p181 = scmp.lt.s32.totalorder %s11, 1
        %s182 = scalar_select %p181, %s11, 1
        %s183 = smul.addr %s182, 9
        %s184 = smul.addr %s183, 2
        %s185 = scalar_lea.vmem %s0, %s184
      $region36: #{up_conv_forward.1} parent=31 // pred_fallthru
        _
    $region32: #{up_conv_forward.1} parent=5 // pred_fallthru
      _
    %p186 = scmp.le.s32.totalorder 1, %s11
    %p187 = scmp.lt.s32.totalorder %s11, 3
    %p188 = pnand %p186, %p187
    %p189 = pneg %p188
    // Predicated region
    $region37: #{up_conv_forward.1} parent=5 // pred_check
      _
    $region38: #{up_conv_forward.1} parent=5 // pred_check_branch
      %191 = sbr.rel (%p188) target = $region40
    $region39: #{up_conv_forward.1} parent=5 // pred_region
      %s192 = ssub.s32 %s11, 1
      %p193 = scmp.lt.s32.totalorder %s16, 1
      %s194 = scalar_select %p193, %s16, 1
      %s195 = smul.addr %s194, 9
      %s196 = smul.addr %s195, 2
      %s197 = scalar_lea.vmem %s0, %s196
      %p198 = pneg %p37
      %p199 = pneg %p34
      %p200 = pneg %p58
      %p201 = pneg %p55
      %p202 = pneg %p79
      %p203 = pneg %p76
      %p204 = pneg %p100
      %p205 = pneg %p97
      %p206 = pneg %p121
      %p207 = pneg %p118
      %p208 = pneg %p147
      %p209 = pneg %p144
      %p210 = scmp.lt.s32.totalorder %s16, 1
      %s211 = scalar_select %p210, %s16, 1
      %s212 = smul.addr %s211, 7
      %s213 = smul.addr %s212, 8
      %s214 = scalar_lea.vmem %s5, %s213
      %p215 = scmp.lt.s32.totalorder %s16, 1
      %s216 = scalar_select %p215, %s16, 1
      %s217 = smul.addr %s216, 9
      %s218 = smul.addr %s217, 2
      %s219 = scalar_lea.vmem %s0, %s218
      %p220 = scmp.lt.s32.totalorder %s16, 1
      %s221 = scalar_select %p220, %s16, 1
      %s222 = smul.addr %s221, 7
      %s223 = smul.addr %s222, 8
      %s224 = scalar_lea.vmem %s5, %s223
      %226 = vst [vmem:[#allocation2 + $0x150] sm:$0xc0] 0
      %227 = vst [vmem:[#allocation2 + $0x158] sm:$0xc0] 0
      %228 = vst [vmem:[#allocation2 + $0x160] sm:$0xc0] 0
      %229 = vst [vmem:[#allocation2 + $0x168] sm:$0xc0] 0
      %230 = vst [vmem:[#allocation2 + $0x170] sm:$0xc0] 0
      %231 = vst [vmem:[#allocation2 + $0x178] sm:$0xc0] 0
      %232 = vst [vmem:[#allocation2 + $0x180] sm:$0xc0] 0
      %233 = vst [vmem:[#allocation2 + $0x188] sm:$0xff] 0
      %234 = vst [vmem:[#allocation2 + $0x190] sm:$0xff] 0
      %235 = vst [vmem:[#allocation2 + $0x198] sm:$0xff] 0
      %236 = vst [vmem:[#allocation2 + $0x1a0] sm:$0xff] 0
      %237 = vst [vmem:[#allocation2 + $0x1a8] sm:$0xff] 0
      %238 = vst [vmem:[#allocation2 + $0x1b0] sm:$0xff] 0
      %239 = vst [vmem:[#allocation2 + $0x1b8] sm:$0xff] 0
      %v240 = vld [vmem:[%s219] sm:$0xff]
      %v241 = vld [vmem:[%s219 + $0x8] sm:$0x3f]
      %v244 = vcombine.high %v240, %v240
      %v246 = vunpack.c.l.s4 1983009808
      %v247 = vunpack.c.0.s8 %v246
      %v248 = vlaneseq
      %v249 = vshrl.u32 %v248, 7
      %v250 = vsub.s32 %v247, %v249
      %v251 = vrot.slane %v240, %v250
      %v253 = vunpack.c.l.s4 1983009808
      %v254 = vunpack.c.0.s8 %v253
      %v255 = vlaneseq
      %v256 = vshrl.u32 %v255, 7
      %v257 = vsub.s32 %v254, %v256
      %v258 = vrot.slane %v244, %v257
      %v259 = vcombine.high %v251, %v251
      %v260 = vcombine.high %v258, %v258
      %v261 = vcombine.high %v241, %v241
      %v263 = vunpack.c.l.s4 1983009808
      %v264 = vunpack.c.0.s8 %v263
      %v265 = vlaneseq
      %v266 = vshrl.u32 %v265, 7
      %v267 = vsub.s32 %v264, %v266
      %v268 = vrot.slane %v241, %v267
      %v270 = vunpack.c.l.s4 1983009808
      %v271 = vunpack.c.0.s8 %v270
      %v272 = vlaneseq
      %v273 = vshrl.u32 %v272, 7
      %v274 = vsub.s32 %v271, %v273
      %v275 = vrot.slane %v261, %v274
      %v276 = vcombine.high %v268, %v268
      %284 = vst [vmem:[#allocation2] sm:$0x3] %v251
      %285 = vst [vmem:[#allocation2 + $0x8] sm:$0x3] %v259
      %286 = vst [vmem:[#allocation2 + $0x10] sm:$0x3] %v258
      %287 = vst [vmem:[#allocation2 + $0x18] sm:$0x3] %v260
      %288 = vst [vmem:[#allocation2 + $0x20] sm:$0x3] %v268
      %289 = vst [vmem:[#allocation2 + $0x28] sm:$0x3] %v276
      %290 = vst [vmem:[#allocation2 + $0x30] sm:$0x3] %v275
      %v291 = vld [vmem:[%s219] sm:$0xff]
      %v292 = vld [vmem:[%s219 + $0x8] sm:$0xff]
      %v295 = vcombine.low %v291, %v291
      %v297 = vunpack.c.l.s4 1983009808
      %v298 = vunpack.c.0.s8 %v297
      %v299 = vlaneseq
      %v300 = vshrl.u32 %v299, 7
      %v301 = vsub.s32 %v298, %v300
      %v302 = vrot.slane %v295, %v301
      %v304 = vunpack.c.l.s4 1983009808
      %v305 = vunpack.c.0.s8 %v304
      %v306 = vlaneseq
      %v307 = vshrl.u32 %v306, 7
      %v308 = vsub.s32 %v305, %v307
      %v309 = vrot.slane %v291, %v308
      %v310 = vcombine.high %v302, %v302
      %v311 = vcombine.high %v309, %v309
      %v312 = vcombine.low %v292, %v292
      %v314 = vunpack.c.l.s4 1983009808
      %v315 = vunpack.c.0.s8 %v314
      %v316 = vlaneseq
      %v317 = vshrl.u32 %v316, 7
      %v318 = vsub.s32 %v315, %v317
      %v319 = vrot.slane %v312, %v318
      %v321 = vunpack.c.l.s4 1983009808
      %v322 = vunpack.c.0.s8 %v321
      %v323 = vlaneseq
      %v324 = vshrl.u32 %v323, 7
      %v325 = vsub.s32 %v322, %v324
      %v326 = vrot.slane %v292, %v325
      %v327 = vcombine.high %v319, %v319
      %v328 = vcombine.high %v326, %v326
      %329 = vrot.lane.b32.xlu0 %v302, 127
      %v330 = vpop.permute.xlu0 %329
      %331 = vrot.lane.b32.xlu0 %v310, 127
      %v332 = vpop.permute.xlu0 %331
      %333 = vrot.lane.b32.xlu0 %v309, 127
      %v334 = vpop.permute.xlu0 %333
      %335 = vrot.lane.b32.xlu0 %v311, 127
      %v336 = vpop.permute.xlu0 %335
      %337 = vrot.lane.b32.xlu0 %v319, 127
      %v338 = vpop.permute.xlu0 %337
      %339 = vrot.lane.b32.xlu0 %v327, 127
      %v340 = vpop.permute.xlu0 %339
      %341 = vrot.lane.b32.xlu0 %v326, 127
      %v342 = vpop.permute.xlu0 %341
      %343 = vrot.lane.b32.xlu0 %v328, 127
      %v344 = vpop.permute.xlu0 %343
      %vm345 = vcmask 1039360
      %v346 = vsel %vm345, %v330, %v332
      %v347 = vsel %vm345, %v332, %v334
      %v348 = vsel %vm345, %v334, %v336
      %v349 = vsel %vm345, %v336, %v338
      %v350 = vsel %vm345, %v338, %v340
      %v351 = vsel %vm345, %v340, %v342
      %v352 = vsel %vm345, %v342, %v344
      %360 = vst [vmem:[#allocation2] sm:$0xc] %v346
      %361 = vst [vmem:[#allocation2 + $0x8] sm:$0xc] %v347
      %362 = vst [vmem:[#allocation2 + $0x10] sm:$0xc] %v348
      %363 = vst [vmem:[#allocation2 + $0x18] sm:$0xc] %v349
      %364 = vst [vmem:[#allocation2 + $0x20] sm:$0xc] %v350
      %365 = vst [vmem:[#allocation2 + $0x28] sm:$0xc] %v351
      %366 = vst [vmem:[#allocation2 + $0x30] sm:$0xc] %v352
      %v367 = vld [vmem:[%s219] sm:$0xff]
      %v368 = vld [vmem:[%s219 + $0x8] sm:$0xff]
      %v371 = vcombine.high %v367, %v367
      %v373 = vunpack.c.l.s4 1983009808
      %v374 = vunpack.c.0.s8 %v373
      %v375 = vlaneseq
      %v376 = vshrl.u32 %v375, 7
      %v377 = vsub.s32 %v374, %v376
      %v378 = vrot.slane %v367, %v377
      %v380 = vunpack.c.l.s4 1983009808
      %v381 = vunpack.c.0.s8 %v380
      %v382 = vlaneseq
      %v383 = vshrl.u32 %v382, 7
      %v384 = vsub.s32 %v381, %v383
      %v385 = vrot.slane %v371, %v384
      %v386 = vcombine.low %v378, %v378
      %v387 = vcombine.low %v385, %v385
      %v388 = vcombine.high %v368, %v368
      %v390 = vunpack.c.l.s4 1983009808
      %v391 = vunpack.c.0.s8 %v390
      %v392 = vlaneseq
      %v393 = vshrl.u32 %v392, 7
      %v394 = vsub.s32 %v391, %v393
      %v395 = vrot.slane %v368, %v394
      %v397 = vunpack.c.l.s4 1983009808
      %v398 = vunpack.c.0.s8 %v397
      %v399 = vlaneseq
      %v400 = vshrl.u32 %v399, 7
      %v401 = vsub.s32 %v398, %v400
      %v402 = vrot.slane %v388, %v401
      %v403 = vcombine.low %v395, %v395
      %v404 = vcombine.low %v402, %v402
      %405 = vrot.lane.b32.xlu0 %v386, 126
      %v406 = vpop.permute.xlu0 %405
      %407 = vrot.lane.b32.xlu0 %v378, 126
      %v408 = vpop.permute.xlu0 %407
      %409 = vrot.lane.b32.xlu0 %v387, 126
      %v410 = vpop.permute.xlu0 %409
      %411 = vrot.lane.b32.xlu0 %v385, 126
      %v412 = vpop.permute.xlu0 %411
      %413 = vrot.lane.b32.xlu0 %v403, 126
      %v414 = vpop.permute.xlu0 %413
      %415 = vrot.lane.b32.xlu0 %v395, 126
      %v416 = vpop.permute.xlu0 %415
      %417 = vrot.lane.b32.xlu0 %v404, 126
      %v418 = vpop.permute.xlu0 %417
      %419 = vrot.lane.b32.xlu0 %v402, 126
      %v420 = vpop.permute.xlu0 %419
      %vm421 = vcmask 1031168
      %v422 = vsel %vm421, %v406, %v408
      %v423 = vsel %vm421, %v408, %v410
      %v424 = vsel %vm421, %v410, %v412
      %v425 = vsel %vm421, %v412, %v414
      %v426 = vsel %vm421, %v414, %v416
      %v427 = vsel %vm421, %v416, %v418
      %v428 = vsel %vm421, %v418, %v420
      %436 = vst [vmem:[#allocation2] sm:$0x30] %v422
      %437 = vst [vmem:[#allocation2 + $0x8] sm:$0x30] %v423
      %438 = vst [vmem:[#allocation2 + $0x10] sm:$0x30] %v424
      %439 = vst [vmem:[#allocation2 + $0x18] sm:$0x30] %v425
      %440 = vst [vmem:[#allocation2 + $0x20] sm:$0x30] %v426
      %441 = vst [vmem:[#allocation2 + $0x28] sm:$0x30] %v427
      %442 = vst [vmem:[#allocation2 + $0x30] sm:$0x30] %v428
      %v443 = vld [vmem:[%s219] sm:$0xff]
      %v444 = vld [vmem:[%s219 + $0x8] sm:$0xff]
      %v447 = vcombine.low %v443, %v443
      %v449 = vunpack.c.l.s4 1983009808
      %v450 = vunpack.c.0.s8 %v449
      %v451 = vlaneseq
      %v452 = vshrl.u32 %v451, 7
      %v453 = vsub.s32 %v450, %v452
      %v454 = vrot.slane %v447, %v453
      %v456 = vunpack.c.l.s4 1983009808
      %v457 = vunpack.c.0.s8 %v456
      %v458 = vlaneseq
      %v459 = vshrl.u32 %v458, 7
      %v460 = vsub.s32 %v457, %v459
      %v461 = vrot.slane %v443, %v460
      %v462 = vcombine.low %v454, %v454
      %v463 = vcombine.low %v461, %v461
      %v464 = vcombine.low %v444, %v444
      %v466 = vunpack.c.l.s4 1983009808
      %v467 = vunpack.c.0.s8 %v466
      %v468 = vlaneseq
      %v469 = vshrl.u32 %v468, 7
      %v470 = vsub.s32 %v467, %v469
      %v471 = vrot.slane %v464, %v470
      %v473 = vunpack.c.l.s4 1983009808
      %v474 = vunpack.c.0.s8 %v473
      %v475 = vlaneseq
      %v476 = vshrl.u32 %v475, 7
      %v477 = vsub.s32 %v474, %v476
      %v478 = vrot.slane %v444, %v477
      %v479 = vcombine.low %v471, %v471
      %v480 = vcombine.low %v478, %v478
      %481 = vrot.lane.b32.xlu0 %v462, 118
      %v482 = vpop.permute.xlu0 %481
      %483 = vrot.lane.b32.xlu0 %v454, 118
      %v484 = vpop.permute.xlu0 %483
      %485 = vrot.lane.b32.xlu0 %v463, 118
      %v486 = vpop.permute.xlu0 %485
      %487 = vrot.lane.b32.xlu0 %v461, 118
      %v488 = vpop.permute.xlu0 %487
      %489 = vrot.lane.b32.xlu0 %v479, 118
      %v490 = vpop.permute.xlu0 %489
      %491 = vrot.lane.b32.xlu0 %v471, 118
      %v492 = vpop.permute.xlu0 %491
      %493 = vrot.lane.b32.xlu0 %v480, 118
      %v494 = vpop.permute.xlu0 %493
      %495 = vrot.lane.b32.xlu0 %v478, 118
      %v496 = vpop.permute.xlu0 %495
      %vm497 = vcmask 965632
      %v498 = vsel %vm497, %v482, %v484
      %v499 = vsel %vm497, %v484, %v486
      %v500 = vsel %vm497, %v486, %v488
      %v501 = vsel %vm497, %v488, %v490
      %v502 = vsel %vm497, %v490, %v492
      %v503 = vsel %vm497, %v492, %v494
      %v504 = vsel %vm497, %v494, %v496
      %512 = vst [vmem:[#allocation2] sm:$0xc0] %v498
      %513 = vst [vmem:[#allocation2 + $0x8] sm:$0xc0] %v499
      %514 = vst [vmem:[#allocation2 + $0x10] sm:$0xc0] %v500
      %515 = vst [vmem:[#allocation2 + $0x18] sm:$0xc0] %v501
      %516 = vst [vmem:[#allocation2 + $0x20] sm:$0xc0] %v502
      %517 = vst [vmem:[#allocation2 + $0x28] sm:$0xc0] %v503
      %518 = vst [vmem:[#allocation2 + $0x30] sm:$0xc0] %v504
      %v519 = vld [vmem:[%s219] sm:$0xff]
      %v520 = vld [vmem:[%s219 + $0x8] sm:$0xff]
      %v523 = vcombine.high %v519, %v519
      %v525 = vunpack.c.l.s4 1983009808
      %v526 = vunpack.c.0.s8 %v525
      %v527 = vlaneseq
      %v528 = vshrl.u32 %v527, 7
      %v529 = vsub.s32 %v526, %v528
      %v530 = vrot.slane %v519, %v529
      %v532 = vunpack.c.l.s4 1983009808
      %v533 = vunpack.c.0.s8 %v532
      %v534 = vlaneseq
      %v535 = vshrl.u32 %v534, 7
      %v536 = vsub.s32 %v533, %v535
      %v537 = vrot.slane %v523, %v536
      %v538 = vcombine.high %v530, %v530
      %v539 = vcombine.high %v537, %v537
      %v540 = vcombine.high %v520, %v520
      %v542 = vunpack.c.l.s4 1983009808
      %v543 = vunpack.c.0.s8 %v542
      %v544 = vlaneseq
      %v545 = vshrl.u32 %v544, 7
      %v546 = vsub.s32 %v543, %v545
      %v547 = vrot.slane %v520, %v546
      %v549 = vunpack.c.l.s4 1983009808
      %v550 = vunpack.c.0.s8 %v549
      %v551 = vlaneseq
      %v552 = vshrl.u32 %v551, 7
      %v553 = vsub.s32 %v550, %v552
      %v554 = vrot.slane %v540, %v553
      %v555 = vcombine.high %v547, %v547
      %v556 = vcombine.high %v554, %v554
      %557 = vrot.lane.b32.xlu0 %v530, 117
      %v558 = vpop.permute.xlu0 %557
      %559 = vrot.lane.b32.xlu0 %v538, 117
      %v560 = vpop.permute.xlu0 %559
      %561 = vrot.lane.b32.xlu0 %v537, 117
      %v562 = vpop.permute.xlu0 %561
      %563 = vrot.lane.b32.xlu0 %v539, 117
      %v564 = vpop.permute.xlu0 %563
      %565 = vrot.lane.b32.xlu0 %v547, 117
      %v566 = vpop.permute.xlu0 %565
      %567 = vrot.lane.b32.xlu0 %v555, 117
      %v568 = vpop.permute.xlu0 %567
      %569 = vrot.lane.b32.xlu0 %v554, 117
      %v570 = vpop.permute.xlu0 %569
      %571 = vrot.lane.b32.xlu0 %v556, 117
      %v572 = vpop.permute.xlu0 %571
      %vm573 = vcmask 957440
      %v574 = vsel %vm573, %v558, %v560
      %v575 = vsel %vm573, %v560, %v562
      %v576 = vsel %vm573, %v562, %v564
      %v577 = vsel %vm573, %v564, %v566
      %v578 = vsel %vm573, %v566, %v568
      %v579 = vsel %vm573, %v568, %v570
      %v580 = vsel %vm573, %v570, %v572
      %588 = vst [vmem:[#allocation2 + $0x38] sm:$0x3] %v574
      %589 = vst [vmem:[#allocation2 + $0x40] sm:$0x3] %v575
      %590 = vst [vmem:[#allocation2 + $0x48] sm:$0x3] %v576
      %591 = vst [vmem:[#allocation2 + $0x50] sm:$0x3] %v577
      %592 = vst [vmem:[#allocation2 + $0x58] sm:$0x3] %v578
      %593 = vst [vmem:[#allocation2 + $0x60] sm:$0x3] %v579
      %594 = vst [vmem:[#allocation2 + $0x68] sm:$0x3] %v580
      %v595 = vld [vmem:[%s219] sm:$0xff]
      %v596 = vld [vmem:[%s219 + $0x8] sm:$0xff]
      %v599 = vcombine.low %v595, %v595
      %v601 = vunpack.c.l.s4 1983009808
      %v602 = vunpack.c.0.s8 %v601
      %v603 = vlaneseq
      %v604 = vshrl.u32 %v603, 7
      %v605 = vsub.s32 %v602, %v604
      %v606 = vrot.slane %v599, %v605
      %v608 = vunpack.c.l.s4 1983009808
      %v609 = vunpack.c.0.s8 %v608
      %v610 = vlaneseq
      %v611 = vshrl.u32 %v610, 7
      %v612 = vsub.s32 %v609, %v611
      %v613 = vrot.slane %v595, %v612
      %v614 = vcombine.high %v606, %v606
      %v615 = vcombine.high %v613, %v613
      %v616 = vcombine.low %v596, %v596
      %v618 = vunpack.c.l.s4 1983009808
      %v619 = vunpack.c.0.s8 %v618
      %v620 = vlaneseq
      %v621 = vshrl.u32 %v620, 7
      %v622 = vsub.s32 %v619, %v621
      %v623 = vrot.slane %v616, %v622
      %v625 = vunpack.c.l.s4 1983009808
      %v626 = vunpack.c.0.s8 %v625
      %v627 = vlaneseq
      %v628 = vshrl.u32 %v627, 7
      %v629 = vsub.s32 %v626, %v628
      %v630 = vrot.slane %v596, %v629
      %v631 = vcombine.high %v623, %v623
      %v632 = vcombine.high %v630, %v630
      %633 = vrot.lane.b32.xlu0 %v606, 116
      %v634 = vpop.permute.xlu0 %633
      %635 = vrot.lane.b32.xlu0 %v614, 116
      %v636 = vpop.permute.xlu0 %635
      %637 = vrot.lane.b32.xlu0 %v613, 116
      %v638 = vpop.permute.xlu0 %637
      %639 = vrot.lane.b32.xlu0 %v615, 116
      %v640 = vpop.permute.xlu0 %639
      %641 = vrot.lane.b32.xlu0 %v623, 116
      %v642 = vpop.permute.xlu0 %641
      %643 = vrot.lane.b32.xlu0 %v631, 116
      %v644 = vpop.permute.xlu0 %643
      %645 = vrot.lane.b32.xlu0 %v630, 116
      %v646 = vpop.permute.xlu0 %645
      %647 = vrot.lane.b32.xlu0 %v632, 116
      %v648 = vpop.permute.xlu0 %647
      %vm649 = vcmask 949248
      %v650 = vsel %vm649, %v634, %v636
      %v651 = vsel %vm649, %v636, %v638
      %v652 = vsel %vm649, %v638, %v640
      %v653 = vsel %vm649, %v640, %v642
      %v654 = vsel %vm649, %v642, %v644
      %v655 = vsel %vm649, %v644, %v646
      %v656 = vsel %vm649, %v646, %v648
      %664 = vst [vmem:[#allocation2 + $0x38] sm:$0xc] %v650
      %665 = vst [vmem:[#allocation2 + $0x40] sm:$0xc] %v651
      %666 = vst [vmem:[#allocation2 + $0x48] sm:$0xc] %v652
      %667 = vst [vmem:[#allocation2 + $0x50] sm:$0xc] %v653
      %668 = vst [vmem:[#allocation2 + $0x58] sm:$0xc] %v654
      %669 = vst [vmem:[#allocation2 + $0x60] sm:$0xc] %v655
      %670 = vst [vmem:[#allocation2 + $0x68] sm:$0xc] %v656
      %v671 = vld [vmem:[%s219] sm:$0xff]
      %v672 = vld [vmem:[%s219 + $0x8] sm:$0xff]
      %v675 = vcombine.high %v671, %v671
      %v677 = vunpack.c.l.s4 1983009808
      %v678 = vunpack.c.0.s8 %v677
      %v679 = vlaneseq
      %v680 = vshrl.u32 %v679, 7
      %v681 = vsub.s32 %v678, %v680
      %v682 = vrot.slane %v671, %v681
      %v684 = vunpack.c.l.s4 1983009808
      %v685 = vunpack.c.0.s8 %v684
      %v686 = vlaneseq
      %v687 = vshrl.u32 %v686, 7
      %v688 = vsub.s32 %v685, %v687
      %v689 = vrot.slane %v675, %v688
      %v690 = vcombine.low %v682, %v682
      %v691 = vcombine.low %v689, %v689
      %v692 = vcombine.high %v672, %v672
      %v694 = vunpack.c.l.s4 1983009808
      %v695 = vunpack.c.0.s8 %v694
      %v696 = vlaneseq
      %v697 = vshrl.u32 %v696, 7
      %v698 = vsub.s32 %v695, %v697
      %v699 = vrot.slane %v672, %v698
      %v701 = vunpack.c.l.s4 1983009808
      %v702 = vunpack.c.0.s8 %v701
      %v703 = vlaneseq
      %v704 = vshrl.u32 %v703, 7
      %v705 = vsub.s32 %v702, %v704
      %v706 = vrot.slane %v692, %v705
      %v707 = vcombine.low %v699, %v699
      %v708 = vcombine.low %v706, %v706
      %709 = vrot.lane.b32.xlu0 %v690, 108
      %v710 = vpop.permute.xlu0 %709
      %711 = vrot.lane.b32.xlu0 %v682, 108
      %v712 = vpop.permute.xlu0 %711
      %713 = vrot.lane.b32.xlu0 %v691, 108
      %v714 = vpop.permute.xlu0 %713
      %715 = vrot.lane.b32.xlu0 %v689, 108
      %v716 = vpop.permute.xlu0 %715
      %717 = vrot.lane.b32.xlu0 %v707, 108
      %v718 = vpop.permute.xlu0 %717
      %719 = vrot.lane.b32.xlu0 %v699, 108
      %v720 = vpop.permute.xlu0 %719
      %721 = vrot.lane.b32.xlu0 %v708, 108
      %v722 = vpop.permute.xlu0 %721
      %723 = vrot.lane.b32.xlu0 %v706, 108
      %v724 = vpop.permute.xlu0 %723
      %vm725 = vcmask 883712
      %v726 = vsel %vm725, %v710, %v712
      %v727 = vsel %vm725, %v712, %v714
      %v728 = vsel %vm725, %v714, %v716
      %v729 = vsel %vm725, %v716, %v718
      %v730 = vsel %vm725, %v718, %v720
      %v731 = vsel %vm725, %v720, %v722
      %v732 = vsel %vm725, %v722, %v724
      %740 = vst [vmem:[#allocation2 + $0x38] sm:$0x30] %v726
      %741 = vst [vmem:[#allocation2 + $0x40] sm:$0x30] %v727
      %742 = vst [vmem:[#allocation2 + $0x48] sm:$0x30] %v728
      %743 = vst [vmem:[#allocation2 + $0x50] sm:$0x30] %v729
      %744 = vst [vmem:[#allocation2 + $0x58] sm:$0x30] %v730
      %745 = vst [vmem:[#allocation2 + $0x60] sm:$0x30] %v731
      %746 = vst [vmem:[#allocation2 + $0x68] sm:$0x30] %v732
      %v747 = vld [vmem:[%s219] sm:$0xff]
      %v748 = vld [vmem:[%s219 + $0x8] sm:$0xff]
      %v751 = vcombine.low %v747, %v747
      %v753 = vunpack.c.l.s4 1983009808
      %v754 = vunpack.c.0.s8 %v753
      %v755 = vlaneseq
      %v756 = vshrl.u32 %v755, 7
      %v757 = vsub.s32 %v754, %v756
      %v758 = vrot.slane %v751, %v757
      %v760 = vunpack.c.l.s4 1983009808
      %v761 = vunpack.c.0.s8 %v760
      %v762 = vlaneseq
      %v763 = vshrl.u32 %v762, 7
      %v764 = vsub.s32 %v761, %v763
      %v765 = vrot.slane %v747, %v764
      %v766 = vcombine.low %v758, %v758
      %v767 = vcombine.low %v765, %v765
      %v768 = vcombine.low %v748, %v748
      %v770 = vunpack.c.l.s4 1983009808
      %v771 = vunpack.c.0.s8 %v770
      %v772 = vlaneseq
      %v773 = vshrl.u32 %v772, 7
      %v774 = vsub.s32 %v771, %v773
      %v775 = vrot.slane %v768, %v774
      %v777 = vunpack.c.l.s4 1983009808
      %v778 = vunpack.c.0.s8 %v777
      %v779 = vlaneseq
      %v780 = vshrl.u32 %v779, 7
      %v781 = vsub.s32 %v778, %v780
      %v782 = vrot.slane %v748, %v781
      %v783 = vcombine.low %v775, %v775
      %v784 = vcombine.low %v782, %v782
      %785 = vrot.lane.b32.xlu0 %v766, 107
      %v786 = vpop.permute.xlu0 %785
      %787 = vrot.lane.b32.xlu0 %v758, 107
      %v788 = vpop.permute.xlu0 %787
      %789 = vrot.lane.b32.xlu0 %v767, 107
      %v790 = vpop.permute.xlu0 %789
      %791 = vrot.lane.b32.xlu0 %v765, 107
      %v792 = vpop.permute.xlu0 %791
      %793 = vrot.lane.b32.xlu0 %v783, 107
      %v794 = vpop.permute.xlu0 %793
      %795 = vrot.lane.b32.xlu0 %v775, 107
      %v796 = vpop.permute.xlu0 %795
      %797 = vrot.lane.b32.xlu0 %v784, 107
      %v798 = vpop.permute.xlu0 %797
      %799 = vrot.lane.b32.xlu0 %v782, 107
      %v800 = vpop.permute.xlu0 %799
      %vm801 = vcmask 875520
      %v802 = vsel %vm801, %v786, %v788
      %v803 = vsel %vm801, %v788, %v790
      %v804 = vsel %vm801, %v790, %v792
      %v805 = vsel %vm801, %v792, %v794
      %v806 = vsel %vm801, %v794, %v796
      %v807 = vsel %vm801, %v796, %v798
      %v808 = vsel %vm801, %v798, %v800
      %816 = vst [vmem:[#allocation2 + $0x38] sm:$0xc0] %v802
      %817 = vst [vmem:[#allocation2 + $0x40] sm:$0xc0] %v803
      %818 = vst [vmem:[#allocation2 + $0x48] sm:$0xc0] %v804
      %819 = vst [vmem:[#allocation2 + $0x50] sm:$0xc0] %v805
      %820 = vst [vmem:[#allocation2 + $0x58] sm:$0xc0] %v806
      %821 = vst [vmem:[#allocation2 + $0x60] sm:$0xc0] %v807
      %822 = vst [vmem:[#allocation2 + $0x68] sm:$0xc0] %v808
      %v823 = vld [vmem:[%s219] sm:$0xff]
      %v824 = vld [vmem:[%s219 + $0x8] sm:$0xff]
      %v827 = vcombine.high %v823, %v823
      %v829 = vunpack.c.l.s4 1983009808
      %v830 = vunpack.c.0.s8 %v829
      %v831 = vlaneseq
      %v832 = vshrl.u32 %v831, 7
      %v833 = vsub.s32 %v830, %v832
      %v834 = vrot.slane %v823, %v833
      %v836 = vunpack.c.l.s4 1983009808
      %v837 = vunpack.c.0.s8 %v836
      %v838 = vlaneseq
      %v839 = vshrl.u32 %v838, 7
      %v840 = vsub.s32 %v837, %v839
      %v841 = vrot.slane %v827, %v840
      %v842 = vcombine.high %v834, %v834
      %v843 = vcombine.high %v841, %v841
      %v844 = vcombine.high %v824, %v824
      %v846 = vunpack.c.l.s4 1983009808
      %v847 = vunpack.c.0.s8 %v846
      %v848 = vlaneseq
      %v849 = vshrl.u32 %v848, 7
      %v850 = vsub.s32 %v847, %v849
      %v851 = vrot.slane %v824, %v850
      %v853 = vunpack.c.l.s4 1983009808
      %v854 = vunpack.c.0.s8 %v853
      %v855 = vlaneseq
      %v856 = vshrl.u32 %v855, 7
      %v857 = vsub.s32 %v854, %v856
      %v858 = vrot.slane %v844, %v857
      %v859 = vcombine.high %v851, %v851
      %v860 = vcombine.high %v858, %v858
      %861 = vrot.lane.b32.xlu0 %v834, 106
      %v862 = vpop.permute.xlu0 %861
      %863 = vrot.lane.b32.xlu0 %v842, 106
      %v864 = vpop.permute.xlu0 %863
      %865 = vrot.lane.b32.xlu0 %v841, 106
      %v866 = vpop.permute.xlu0 %865
      %867 = vrot.lane.b32.xlu0 %v843, 106
      %v868 = vpop.permute.xlu0 %867
      %869 = vrot.lane.b32.xlu0 %v851, 106
      %v870 = vpop.permute.xlu0 %869
      %871 = vrot.lane.b32.xlu0 %v859, 106
      %v872 = vpop.permute.xlu0 %871
      %873 = vrot.lane.b32.xlu0 %v858, 106
      %v874 = vpop.permute.xlu0 %873
      %875 = vrot.lane.b32.xlu0 %v860, 106
      %v876 = vpop.permute.xlu0 %875
      %vm877 = vcmask 867328
      %v878 = vsel %vm877, %v862, %v864
      %v879 = vsel %vm877, %v864, %v866
      %v880 = vsel %vm877, %v866, %v868
      %v881 = vsel %vm877, %v868, %v870
      %v882 = vsel %vm877, %v870, %v872
      %v883 = vsel %vm877, %v872, %v874
      %v884 = vsel %vm877, %v874, %v876
      %892 = vst [vmem:[#allocation2 + $0x70] sm:$0x3] %v878
      %893 = vst [vmem:[#allocation2 + $0x78] sm:$0x3] %v879
      %894 = vst [vmem:[#allocation2 + $0x80] sm:$0x3] %v880
      %895 = vst [vmem:[#allocation2 + $0x88] sm:$0x3] %v881
      %896 = vst [vmem:[#allocation2 + $0x90] sm:$0x3] %v882
      %897 = vst [vmem:[#allocation2 + $0x98] sm:$0x3] %v883
      %898 = vst [vmem:[#allocation2 + $0xa0] sm:$0x3] %v884
      %v899 = vld [vmem:[%s219] sm:$0xff]
      %v900 = vld [vmem:[%s219 + $0x8] sm:$0xff]
      %v903 = vcombine.low %v899, %v899
      %v905 = vunpack.c.l.s4 1983009808
      %v906 = vunpack.c.0.s8 %v905
      %v907 = vlaneseq
      %v908 = vshrl.u32 %v907, 7
      %v909 = vsub.s32 %v906, %v908
      %v910 = vrot.slane %v903, %v909
      %v912 = vunpack.c.l.s4 1983009808
      %v913 = vunpack.c.0.s8 %v912
      %v914 = vlaneseq
      %v915 = vshrl.u32 %v914, 7
      %v916 = vsub.s32 %v913, %v915
      %v917 = vrot.slane %v899, %v916
      %v918 = vcombine.high %v910, %v910
      %v919 = vcombine.high %v917, %v917
      %v920 = vcombine.low %v900, %v900
      %v922 = vunpack.c.l.s4 1983009808
      %v923 = vunpack.c.0.s8 %v922
      %v924 = vlaneseq
      %v925 = vshrl.u32 %v924, 7
      %v926 = vsub.s32 %v923, %v925
      %v927 = vrot.slane %v920, %v926
      %v929 = vunpack.c.l.s4 1983009808
      %v930 = vunpack.c.0.s8 %v929
      %v931 = vlaneseq
      %v932 = vshrl.u32 %v931, 7
      %v933 = vsub.s32 %v930, %v932
      %v934 = vrot.slane %v900, %v933
      %v935 = vcombine.high %v927, %v927
      %v936 = vcombine.high %v934, %v934
      %937 = vrot.lane.b32.xlu0 %v910, 28
      %v938 = vpop.permute.xlu0 %937
      %939 = vrot.lane.b32.xlu0 %v918, 28
      %v940 = vpop.permute.xlu0 %939
      %941 = vrot.lane.b32.xlu0 %v917, 28
      %v942 = vpop.permute.xlu0 %941
      %943 = vrot.lane.b32.xlu0 %v919, 28
      %v944 = vpop.permute.xlu0 %943
      %945 = vrot.lane.b32.xlu0 %v927, 28
      %v946 = vpop.permute.xlu0 %945
      %947 = vrot.lane.b32.xlu0 %v935, 28
      %v948 = vpop.permute.xlu0 %947
      %949 = vrot.lane.b32.xlu0 %v934, 28
      %v950 = vpop.permute.xlu0 %949
      %951 = vrot.lane.b32.xlu0 %v936, 28
      %v952 = vpop.permute.xlu0 %951
      %vm953 = vcmask 228352
      %v954 = vsel %vm953, %v938, %v940
      %v955 = vsel %vm953, %v940, %v942
      %v956 = vsel %vm953, %v942, %v944
      %v957 = vsel %vm953, %v944, %v946
      %v958 = vsel %vm953, %v946, %v948
      %v959 = vsel %vm953, %v948, %v950
      %v960 = vsel %vm953, %v950, %v952
      %968 = vst [vmem:[#allocation2 + $0x70] sm:$0xc] %v954
      %969 = vst [vmem:[#allocation2 + $0x78] sm:$0xc] %v955
      %970 = vst [vmem:[#allocation2 + $0x80] sm:$0xc] %v956
      %971 = vst [vmem:[#allocation2 + $0x88] sm:$0xc] %v957
      %972 = vst [vmem:[#allocation2 + $0x90] sm:$0xc] %v958
      %973 = vst [vmem:[#allocation2 + $0x98] sm:$0xc] %v959
      %974 = vst [vmem:[#allocation2 + $0xa0] sm:$0xc] %v960
      %v975 = vld [vmem:[%s219] sm:$0xff]
      %v976 = vld [vmem:[%s219 + $0x8] sm:$0xff]
      %v979 = vcombine.high %v975, %v975
      %v981 = vunpack.c.l.s4 1983009808
      %v982 = vunpack.c.0.s8 %v981
      %v983 = vlaneseq
      %v984 = vshrl.u32 %v983, 7
      %v985 = vsub.s32 %v982, %v984
      %v986 = vrot.slane %v975, %v985
      %v988 = vunpack.c.l.s4 1983009808
      %v989 = vunpack.c.0.s8 %v988
      %v990 = vlaneseq
      %v991 = vshrl.u32 %v990, 7
      %v992 = vsub.s32 %v989, %v991
      %v993 = vrot.slane %v979, %v992
      %v994 = vcombine.low %v986, %v986
      %v995 = vcombine.low %v993, %v993
      %v996 = vcombine.high %v976, %v976
      %v998 = vunpack.c.l.s4 1983009808
      %v999 = vunpack.c.0.s8 %v998
      %v1000 = vlaneseq
      %v1001 = vshrl.u32 %v1000, 7
      %v1002 = vsub.s32 %v999, %v1001
      %v1003 = vrot.slane %v976, %v1002
      %v1005 = vunpack.c.l.s4 1983009808
      %v1006 = vunpack.c.0.s8 %v1005
      %v1007 = vlaneseq
      %v1008 = vshrl.u32 %v1007, 7
      %v1009 = vsub.s32 %v1006, %v1008
      %v1010 = vrot.slane %v996, %v1009
      %v1011 = vcombine.low %v1003, %v1003
      %v1012 = vcombine.low %v1010, %v1010
      %1013 = vrot.lane.b32.xlu0 %v994, 27
      %v1014 = vpop.permute.xlu0 %1013
      %1015 = vrot.lane.b32.xlu0 %v986, 27
      %v1016 = vpop.permute.xlu0 %1015
      %1017 = vrot.lane.b32.xlu0 %v995, 27
      %v1018 = vpop.permute.xlu0 %1017
      %1019 = vrot.lane.b32.xlu0 %v993, 27
      %v1020 = vpop.permute.xlu0 %1019
      %1021 = vrot.lane.b32.xlu0 %v1011, 27
      %v1022 = vpop.permute.xlu0 %1021
      %1023 = vrot.lane.b32.xlu0 %v1003, 27
      %v1024 = vpop.permute.xlu0 %1023
      %1025 = vrot.lane.b32.xlu0 %v1012, 27
      %v1026 = vpop.permute.xlu0 %1025
      %1027 = vrot.lane.b32.xlu0 %v1010, 27
      %v1028 = vpop.permute.xlu0 %1027
      %vm1029 = vcmask 220160
      %v1030 = vsel %vm1029, %v1014, %v1016
      %v1031 = vsel %vm1029, %v1016, %v1018
      %v1032 = vsel %vm1029, %v1018, %v1020
      %v1033 = vsel %vm1029, %v1020, %v1022
      %v1034 = vsel %vm1029, %v1022, %v1024
      %v1035 = vsel %vm1029, %v1024, %v1026
      %v1036 = vsel %vm1029, %v1026, %v1028
      %1044 = vst [vmem:[#allocation2 + $0x70] sm:$0x30] %v1030
      %1045 = vst [vmem:[#allocation2 + $0x78] sm:$0x30] %v1031
      %1046 = vst [vmem:[#allocation2 + $0x80] sm:$0x30] %v1032
      %1047 = vst [vmem:[#allocation2 + $0x88] sm:$0x30] %v1033
      %1048 = vst [vmem:[#allocation2 + $0x90] sm:$0x30] %v1034
      %1049 = vst [vmem:[#allocation2 + $0x98] sm:$0x30] %v1035
      %1050 = vst [vmem:[#allocation2 + $0xa0] sm:$0x30] %v1036
      %v1051 = vld [vmem:[%s219] sm:$0xff]
      %v1052 = vld [vmem:[%s219 + $0x8] sm:$0xff]
      %v1055 = vcombine.low %v1051, %v1051
      %v1057 = vunpack.c.l.s4 1983009808
      %v1058 = vunpack.c.0.s8 %v1057
      %v1059 = vlaneseq
      %v1060 = vshrl.u32 %v1059, 7
      %v1061 = vsub.s32 %v1058, %v1060
      %v1062 = vrot.slane %v1055, %v1061
      %v1064 = vunpack.c.l.s4 1983009808
      %v1065 = vunpack.c.0.s8 %v1064
      %v1066 = vlaneseq
      %v1067 = vshrl.u32 %v1066, 7
      %v1068 = vsub.s32 %v1065, %v1067
      %v1069 = vrot.slane %v1051, %v1068
      %v1070 = vcombine.low %v1062, %v1062
      %v1071 = vcombine.low %v1069, %v1069
      %v1072 = vcombine.low %v1052, %v1052
      %v1074 = vunpack.c.l.s4 1983009808
      %v1075 = vunpack.c.0.s8 %v1074
      %v1076 = vlaneseq
      %v1077 = vshrl.u32 %v1076, 7
      %v1078 = vsub.s32 %v1075, %v1077
      %v1079 = vrot.slane %v1072, %v1078
      %v1081 = vunpack.c.l.s4 1983009808
      %v1082 = vunpack.c.0.s8 %v1081
      %v1083 = vlaneseq
      %v1084 = vshrl.u32 %v1083, 7
      %v1085 = vsub.s32 %v1082, %v1084
      %v1086 = vrot.slane %v1052, %v1085
      %v1087 = vcombine.low %v1079, %v1079
      %v1088 = vcombine.low %v1086, %v1086
      %1089 = vrot.lane.b32.xlu0 %v1070, 26
      %v1090 = vpop.permute.xlu0 %1089
      %1091 = vrot.lane.b32.xlu0 %v1062, 26
      %v1092 = vpop.permute.xlu0 %1091
      %1093 = vrot.lane.b32.xlu0 %v1071, 26
      %v1094 = vpop.permute.xlu0 %1093
      %1095 = vrot.lane.b32.xlu0 %v1069, 26
      %v1096 = vpop.permute.xlu0 %1095
      %1097 = vrot.lane.b32.xlu0 %v1087, 26
      %v1098 = vpop.permute.xlu0 %1097
      %1099 = vrot.lane.b32.xlu0 %v1079, 26
      %v1100 = vpop.permute.xlu0 %1099
      %1101 = vrot.lane.b32.xlu0 %v1088, 26
      %v1102 = vpop.permute.xlu0 %1101
      %1103 = vrot.lane.b32.xlu0 %v1086, 26
      %v1104 = vpop.permute.xlu0 %1103
      %vm1105 = vcmask 211968
      %v1106 = vsel %vm1105, %v1090, %v1092
      %v1107 = vsel %vm1105, %v1092, %v1094
      %v1108 = vsel %vm1105, %v1094, %v1096
      %v1109 = vsel %vm1105, %v1096, %v1098
      %v1110 = vsel %vm1105, %v1098, %v1100
      %v1111 = vsel %vm1105, %v1100, %v1102
      %v1112 = vsel %vm1105, %v1102, %v1104
      %1120 = vst [vmem:[#allocation2 + $0x70] sm:$0xc0] %v1106
      %1121 = vst [vmem:[#allocation2 + $0x78] sm:$0xc0] %v1107
      %1122 = vst [vmem:[#allocation2 + $0x80] sm:$0xc0] %v1108
      %1123 = vst [vmem:[#allocation2 + $0x88] sm:$0xc0] %v1109
      %1124 = vst [vmem:[#allocation2 + $0x90] sm:$0xc0] %v1110
      %1125 = vst [vmem:[#allocation2 + $0x98] sm:$0xc0] %v1111
      %1126 = vst [vmem:[#allocation2 + $0xa0] sm:$0xc0] %v1112
      %v1127 = vld [vmem:[%s219] sm:$0xff]
      %v1128 = vld [vmem:[%s219 + $0x8] sm:$0xff]
      %v1131 = vcombine.high %v1127, %v1127
      %v1133 = vunpack.c.l.s4 1983009808
      %v1134 = vunpack.c.0.s8 %v1133
      %v1135 = vlaneseq
      %v1136 = vshrl.u32 %v1135, 7
      %v1137 = vsub.s32 %v1134, %v1136
      %v1138 = vrot.slane %v1127, %v1137
      %v1140 = vunpack.c.l.s4 1983009808
      %v1141 = vunpack.c.0.s8 %v1140
      %v1142 = vlaneseq
      %v1143 = vshrl.u32 %v1142, 7
      %v1144 = vsub.s32 %v1141, %v1143
      %v1145 = vrot.slane %v1131, %v1144
      %v1146 = vcombine.high %v1138, %v1138
      %v1147 = vcombine.high %v1145, %v1145
      %v1148 = vcombine.high %v1128, %v1128
      %v1150 = vunpack.c.l.s4 1983009808
      %v1151 = vunpack.c.0.s8 %v1150
      %v1152 = vlaneseq
      %v1153 = vshrl.u32 %v1152, 7
      %v1154 = vsub.s32 %v1151, %v1153
      %v1155 = vrot.slane %v1128, %v1154
      %v1157 = vunpack.c.l.s4 1983009808
      %v1158 = vunpack.c.0.s8 %v1157
      %v1159 = vlaneseq
      %v1160 = vshrl.u32 %v1159, 7
      %v1161 = vsub.s32 %v1158, %v1160
      %v1162 = vrot.slane %v1148, %v1161
      %v1163 = vcombine.high %v1155, %v1155
      %v1164 = vcombine.high %v1162, %v1162
      %1165 = vrot.lane.b32.xlu0 %v1138, 18
      %v1166 = vpop.permute.xlu0 %1165
      %1167 = vrot.lane.b32.xlu0 %v1146, 18
      %v1168 = vpop.permute.xlu0 %1167
      %1169 = vrot.lane.b32.xlu0 %v1145, 18
      %v1170 = vpop.permute.xlu0 %1169
      %1171 = vrot.lane.b32.xlu0 %v1147, 18
      %v1172 = vpop.permute.xlu0 %1171
      %1173 = vrot.lane.b32.xlu0 %v1155, 18
      %v1174 = vpop.permute.xlu0 %1173
      %1175 = vrot.lane.b32.xlu0 %v1163, 18
      %v1176 = vpop.permute.xlu0 %1175
      %1177 = vrot.lane.b32.xlu0 %v1162, 18
      %v1178 = vpop.permute.xlu0 %1177
      %1179 = vrot.lane.b32.xlu0 %v1164, 18
      %v1180 = vpop.permute.xlu0 %1179
      %vm1181 = vcmask 146432
      %v1182 = vsel %vm1181, %v1166, %v1168
      %v1183 = vsel %vm1181, %v1168, %v1170
      %v1184 = vsel %vm1181, %v1170, %v1172
      %v1185 = vsel %vm1181, %v1172, %v1174
      %v1186 = vsel %vm1181, %v1174, %v1176
      %v1187 = vsel %vm1181, %v1176, %v1178
      %v1188 = vsel %vm1181, %v1178, %v1180
      %1196 = vst [vmem:[#allocation2 + $0xa8] sm:$0x3] %v1182
      %1197 = vst [vmem:[#allocation2 + $0xb0] sm:$0x3] %v1183
      %1198 = vst [vmem:[#allocation2 + $0xb8] sm:$0x3] %v1184
      %1199 = vst [vmem:[#allocation2 + $0xc0] sm:$0x3] %v1185
      %1200 = vst [vmem:[#allocation2 + $0xc8] sm:$0x3] %v1186
      %1201 = vst [vmem:[#allocation2 + $0xd0] sm:$0x3] %v1187
      %1202 = vst [vmem:[#allocation2 + $0xd8] sm:$0x3] %v1188
      %v1203 = vld [vmem:[%s219] sm:$0xff]
      %v1204 = vld [vmem:[%s219 + $0x8] sm:$0xff]
      %v1207 = vcombine.low %v1203, %v1203
      %v1209 = vunpack.c.l.s4 1983009808
      %v1210 = vunpack.c.0.s8 %v1209
      %v1211 = vlaneseq
      %v1212 = vshrl.u32 %v1211, 7
      %v1213 = vsub.s32 %v1210, %v1212
      %v1214 = vrot.slane %v1207, %v1213
      %v1216 = vunpack.c.l.s4 1983009808
      %v1217 = vunpack.c.0.s8 %v1216
      %v1218 = vlaneseq
      %v1219 = vshrl.u32 %v1218, 7
      %v1220 = vsub.s32 %v1217, %v1219
      %v1221 = vrot.slane %v1203, %v1220
      %v1222 = vcombine.high %v1214, %v1214
      %v1223 = vcombine.high %v1221, %v1221
      %v1224 = vcombine.low %v1204, %v1204
      %v1226 = vunpack.c.l.s4 1983009808
      %v1227 = vunpack.c.0.s8 %v1226
      %v1228 = vlaneseq
      %v1229 = vshrl.u32 %v1228, 7
      %v1230 = vsub.s32 %v1227, %v1229
      %v1231 = vrot.slane %v1224, %v1230
      %v1233 = vunpack.c.l.s4 1983009808
      %v1234 = vunpack.c.0.s8 %v1233
      %v1235 = vlaneseq
      %v1236 = vshrl.u32 %v1235, 7
      %v1237 = vsub.s32 %v1234, %v1236
      %v1238 = vrot.slane %v1204, %v1237
      %v1239 = vcombine.high %v1231, %v1231
      %v1240 = vcombine.high %v1238, %v1238
      %1241 = vrot.lane.b32.xlu0 %v1214, 17
      %v1242 = vpop.permute.xlu0 %1241
      %1243 = vrot.lane.b32.xlu0 %v1222, 17
      %v1244 = vpop.permute.xlu0 %1243
      %1245 = vrot.lane.b32.xlu0 %v1221, 17
      %v1246 = vpop.permute.xlu0 %1245
      %1247 = vrot.lane.b32.xlu0 %v1223, 17
      %v1248 = vpop.permute.xlu0 %1247
      %1249 = vrot.lane.b32.xlu0 %v1231, 17
      %v1250 = vpop.permute.xlu0 %1249
      %1251 = vrot.lane.b32.xlu0 %v1239, 17
      %v1252 = vpop.permute.xlu0 %1251
      %1253 = vrot.lane.b32.xlu0 %v1238, 17
      %v1254 = vpop.permute.xlu0 %1253
      %1255 = vrot.lane.b32.xlu0 %v1240, 17
      %v1256 = vpop.permute.xlu0 %1255
      %vm1257 = vcmask 138240
      %v1258 = vsel %vm1257, %v1242, %v1244
      %v1259 = vsel %vm1257, %v1244, %v1246
      %v1260 = vsel %vm1257, %v1246, %v1248
      %v1261 = vsel %vm1257, %v1248, %v1250
      %v1262 = vsel %vm1257, %v1250, %v1252
      %v1263 = vsel %vm1257, %v1252, %v1254
      %v1264 = vsel %vm1257, %v1254, %v1256
      %1272 = vst [vmem:[#allocation2 + $0xa8] sm:$0xc] %v1258
      %1273 = vst [vmem:[#allocation2 + $0xb0] sm:$0xc] %v1259
      %1274 = vst [vmem:[#allocation2 + $0xb8] sm:$0xc] %v1260
      %1275 = vst [vmem:[#allocation2 + $0xc0] sm:$0xc] %v1261
      %1276 = vst [vmem:[#allocation2 + $0xc8] sm:$0xc] %v1262
      %1277 = vst [vmem:[#allocation2 + $0xd0] sm:$0xc] %v1263
      %1278 = vst [vmem:[#allocation2 + $0xd8] sm:$0xc] %v1264
      %v1279 = vld [vmem:[%s219] sm:$0xff]
      %v1280 = vld [vmem:[%s219 + $0x8] sm:$0xff]
      %v1283 = vcombine.high %v1279, %v1279
      %v1285 = vunpack.c.l.s4 1983009808
      %v1286 = vunpack.c.0.s8 %v1285
      %v1287 = vlaneseq
      %v1288 = vshrl.u32 %v1287, 7
      %v1289 = vsub.s32 %v1286, %v1288
      %v1290 = vrot.slane %v1279, %v1289
      %v1292 = vunpack.c.l.s4 1983009808
      %v1293 = vunpack.c.0.s8 %v1292
      %v1294 = vlaneseq
      %v1295 = vshrl.u32 %v1294, 7
      %v1296 = vsub.s32 %v1293, %v1295
      %v1297 = vrot.slane %v1283, %v1296
      %v1298 = vcombine.low %v1290, %v1290
      %v1299 = vcombine.low %v1297, %v1297
      %v1300 = vcombine.high %v1280, %v1280
      %v1302 = vunpack.c.l.s4 1983009808
      %v1303 = vunpack.c.0.s8 %v1302
      %v1304 = vlaneseq
      %v1305 = vshrl.u32 %v1304, 7
      %v1306 = vsub.s32 %v1303, %v1305
      %v1307 = vrot.slane %v1280, %v1306
      %v1309 = vunpack.c.l.s4 1983009808
      %v1310 = vunpack.c.0.s8 %v1309
      %v1311 = vlaneseq
      %v1312 = vshrl.u32 %v1311, 7
      %v1313 = vsub.s32 %v1310, %v1312
      %v1314 = vrot.slane %v1300, %v1313
      %v1315 = vcombine.low %v1307, %v1307
      %v1316 = vcombine.low %v1314, %v1314
      %1317 = vrot.lane.b32.xlu0 %v1298, 16
      %v1318 = vpop.permute.xlu0 %1317
      %1319 = vrot.lane.b32.xlu0 %v1290, 16
      %v1320 = vpop.permute.xlu0 %1319
      %1321 = vrot.lane.b32.xlu0 %v1299, 16
      %v1322 = vpop.permute.xlu0 %1321
      %1323 = vrot.lane.b32.xlu0 %v1297, 16
      %v1324 = vpop.permute.xlu0 %1323
      %1325 = vrot.lane.b32.xlu0 %v1315, 16
      %v1326 = vpop.permute.xlu0 %1325
      %1327 = vrot.lane.b32.xlu0 %v1307, 16
      %v1328 = vpop.permute.xlu0 %1327
      %1329 = vrot.lane.b32.xlu0 %v1316, 16
      %v1330 = vpop.permute.xlu0 %1329
      %1331 = vrot.lane.b32.xlu0 %v1314, 16
      %v1332 = vpop.permute.xlu0 %1331
      %vm1333 = vcmask 130048
      %v1334 = vsel %vm1333, %v1318, %v1320
      %v1335 = vsel %vm1333, %v1320, %v1322
      %v1336 = vsel %vm1333, %v1322, %v1324
      %v1337 = vsel %vm1333, %v1324, %v1326
      %v1338 = vsel %vm1333, %v1326, %v1328
      %v1339 = vsel %vm1333, %v1328, %v1330
      %v1340 = vsel %vm1333, %v1330, %v1332
      %1348 = vst [vmem:[#allocation2 + $0xa8] sm:$0x30] %v1334
      %1349 = vst [vmem:[#allocation2 + $0xb0] sm:$0x30] %v1335
      %1350 = vst [vmem:[#allocation2 + $0xb8] sm:$0x30] %v1336
      %1351 = vst [vmem:[#allocation2 + $0xc0] sm:$0x30] %v1337
      %1352 = vst [vmem:[#allocation2 + $0xc8] sm:$0x30] %v1338
      %1353 = vst [vmem:[#allocation2 + $0xd0] sm:$0x30] %v1339
      %1354 = vst [vmem:[#allocation2 + $0xd8] sm:$0x30] %v1340
      %v1355 = vld [vmem:[%s219] sm:$0xff]
      %v1356 = vld [vmem:[%s219 + $0x8] sm:$0xff]
      %v1359 = vcombine.low %v1355, %v1355
      %v1361 = vunpack.c.l.s4 1983009808
      %v1362 = vunpack.c.0.s8 %v1361
      %v1363 = vlaneseq
      %v1364 = vshrl.u32 %v1363, 7
      %v1365 = vsub.s32 %v1362, %v1364
      %v1366 = vrot.slane %v1359, %v1365
      %v1368 = vunpack.c.l.s4 1983009808
      %v1369 = vunpack.c.0.s8 %v1368
      %v1370 = vlaneseq
      %v1371 = vshrl.u32 %v1370, 7
      %v1372 = vsub.s32 %v1369, %v1371
      %v1373 = vrot.slane %v1355, %v1372
      %v1374 = vcombine.low %v1366, %v1366
      %v1375 = vcombine.low %v1373, %v1373
      %v1376 = vcombine.low %v1356, %v1356
      %v1378 = vunpack.c.l.s4 1983009808
      %v1379 = vunpack.c.0.s8 %v1378
      %v1380 = vlaneseq
      %v1381 = vshrl.u32 %v1380, 7
      %v1382 = vsub.s32 %v1379, %v1381
      %v1383 = vrot.slane %v1376, %v1382
      %v1385 = vunpack.c.l.s4 1983009808
      %v1386 = vunpack.c.0.s8 %v1385
      %v1387 = vlaneseq
      %v1388 = vshrl.u32 %v1387, 7
      %v1389 = vsub.s32 %v1386, %v1388
      %v1390 = vrot.slane %v1356, %v1389
      %v1391 = vcombine.low %v1383, %v1383
      %v1392 = vcombine.low %v1390, %v1390
      %1393 = vrot.lane.b32.xlu0 %v1374, 8
      %v1394 = vpop.permute.xlu0 %1393
      %1395 = vrot.lane.b32.xlu0 %v1366, 8
      %v1396 = vpop.permute.xlu0 %1395
      %1397 = vrot.lane.b32.xlu0 %v1375, 8
      %v1398 = vpop.permute.xlu0 %1397
      %1399 = vrot.lane.b32.xlu0 %v1373, 8
      %v1400 = vpop.permute.xlu0 %1399
      %1401 = vrot.lane.b32.xlu0 %v1391, 8
      %v1402 = vpop.permute.xlu0 %1401
      %1403 = vrot.lane.b32.xlu0 %v1383, 8
      %v1404 = vpop.permute.xlu0 %1403
      %1405 = vrot.lane.b32.xlu0 %v1392, 8
      %v1406 = vpop.permute.xlu0 %1405
      %1407 = vrot.lane.b32.xlu0 %v1390, 8
      %v1408 = vpop.permute.xlu0 %1407
      %vm1409 = vcmask 64512
      %v1410 = vsel %vm1409, %v1394, %v1396
      %v1411 = vsel %vm1409, %v1396, %v1398
      %v1412 = vsel %vm1409, %v1398, %v1400
      %v1413 = vsel %vm1409, %v1400, %v1402
      %v1414 = vsel %vm1409, %v1402, %v1404
      %v1415 = vsel %vm1409, %v1404, %v1406
      %v1416 = vsel %vm1409, %v1406, %v1408
      %1424 = vst [vmem:[#allocation2 + $0xa8] sm:$0xc0] %v1410
      %1425 = vst [vmem:[#allocation2 + $0xb0] sm:$0xc0] %v1411
      %1426 = vst [vmem:[#allocation2 + $0xb8] sm:$0xc0] %v1412
      %1427 = vst [vmem:[#allocation2 + $0xc0] sm:$0xc0] %v1413
      %1428 = vst [vmem:[#allocation2 + $0xc8] sm:$0xc0] %v1414
      %1429 = vst [vmem:[#allocation2 + $0xd0] sm:$0xc0] %v1415
      %1430 = vst [vmem:[#allocation2 + $0xd8] sm:$0xc0] %v1416
      %v1431 = vld [vmem:[%s219] sm:$0xff]
      %v1432 = vld [vmem:[%s219 + $0x8] sm:$0xff]
      %v1435 = vcombine.high %v1431, %v1431
      %v1437 = vunpack.c.l.s4 1983009808
      %v1438 = vunpack.c.0.s8 %v1437
      %v1439 = vlaneseq
      %v1440 = vshrl.u32 %v1439, 7
      %v1441 = vsub.s32 %v1438, %v1440
      %v1442 = vrot.slane %v1431, %v1441
      %v1444 = vunpack.c.l.s4 1983009808
      %v1445 = vunpack.c.0.s8 %v1444
      %v1446 = vlaneseq
      %v1447 = vshrl.u32 %v1446, 7
      %v1448 = vsub.s32 %v1445, %v1447
      %v1449 = vrot.slane %v1435, %v1448
      %v1450 = vcombine.high %v1442, %v1442
      %v1451 = vcombine.high %v1449, %v1449
      %v1452 = vcombine.high %v1432, %v1432
      %v1454 = vunpack.c.l.s4 1983009808
      %v1455 = vunpack.c.0.s8 %v1454
      %v1456 = vlaneseq
      %v1457 = vshrl.u32 %v1456, 7
      %v1458 = vsub.s32 %v1455, %v1457
      %v1459 = vrot.slane %v1432, %v1458
      %v1461 = vunpack.c.l.s4 1983009808
      %v1462 = vunpack.c.0.s8 %v1461
      %v1463 = vlaneseq
      %v1464 = vshrl.u32 %v1463, 7
      %v1465 = vsub.s32 %v1462, %v1464
      %v1466 = vrot.slane %v1452, %v1465
      %v1467 = vcombine.high %v1459, %v1459
      %v1468 = vcombine.high %v1466, %v1466
      %1469 = vrot.lane.b32.xlu0 %v1442, 7
      %v1470 = vpop.permute.xlu0 %1469
      %1471 = vrot.lane.b32.xlu0 %v1450, 7
      %v1472 = vpop.permute.xlu0 %1471
      %1473 = vrot.lane.b32.xlu0 %v1449, 7
      %v1474 = vpop.permute.xlu0 %1473
      %1475 = vrot.lane.b32.xlu0 %v1451, 7
      %v1476 = vpop.permute.xlu0 %1475
      %1477 = vrot.lane.b32.xlu0 %v1459, 7
      %v1478 = vpop.permute.xlu0 %1477
      %1479 = vrot.lane.b32.xlu0 %v1467, 7
      %v1480 = vpop.permute.xlu0 %1479
      %1481 = vrot.lane.b32.xlu0 %v1466, 7
      %v1482 = vpop.permute.xlu0 %1481
      %1483 = vrot.lane.b32.xlu0 %v1468, 7
      %v1484 = vpop.permute.xlu0 %1483
      %vm1485 = vcmask 56320
      %v1486 = vsel %vm1485, %v1470, %v1472
      %v1487 = vsel %vm1485, %v1472, %v1474
      %v1488 = vsel %vm1485, %v1474, %v1476
      %v1489 = vsel %vm1485, %v1476, %v1478
      %v1490 = vsel %vm1485, %v1478, %v1480
      %v1491 = vsel %vm1485, %v1480, %v1482
      %v1492 = vsel %vm1485, %v1482, %v1484
      %1500 = vst [vmem:[#allocation2 + $0xe0] sm:$0x3] %v1486
      %1501 = vst [vmem:[#allocation2 + $0xe8] sm:$0x3] %v1487
      %1502 = vst [vmem:[#allocation2 + $0xf0] sm:$0x3] %v1488
      %1503 = vst [vmem:[#allocation2 + $0xf8] sm:$0x3] %v1489
      %1504 = vst [vmem:[#allocation2 + $0x100] sm:$0x3] %v1490
      %1505 = vst [vmem:[#allocation2 + $0x108] sm:$0x3] %v1491
      %1506 = vst [vmem:[#allocation2 + $0x110] sm:$0x3] %v1492
      %v1507 = vld [vmem:[%s219] sm:$0xff]
      %v1508 = vld [vmem:[%s219 + $0x8] sm:$0xff]
      %v1511 = vcombine.low %v1507, %v1507
      %v1513 = vunpack.c.l.s4 1983009808
      %v1514 = vunpack.c.0.s8 %v1513
      %v1515 = vlaneseq
      %v1516 = vshrl.u32 %v1515, 7
      %v1517 = vsub.s32 %v1514, %v1516
      %v1518 = vrot.slane %v1511, %v1517
      %v1520 = vunpack.c.l.s4 1983009808
      %v1521 = vunpack.c.0.s8 %v1520
      %v1522 = vlaneseq
      %v1523 = vshrl.u32 %v1522, 7
      %v1524 = vsub.s32 %v1521, %v1523
      %v1525 = vrot.slane %v1507, %v1524
      %v1526 = vcombine.high %v1518, %v1518
      %v1527 = vcombine.high %v1525, %v1525
      %v1528 = vcombine.low %v1508, %v1508
      %v1530 = vunpack.c.l.s4 1983009808
      %v1531 = vunpack.c.0.s8 %v1530
      %v1532 = vlaneseq
      %v1533 = vshrl.u32 %v1532, 7
      %v1534 = vsub.s32 %v1531, %v1533
      %v1535 = vrot.slane %v1528, %v1534
      %v1537 = vunpack.c.l.s4 1983009808
      %v1538 = vunpack.c.0.s8 %v1537
      %v1539 = vlaneseq
      %v1540 = vshrl.u32 %v1539, 7
      %v1541 = vsub.s32 %v1538, %v1540
      %v1542 = vrot.slane %v1508, %v1541
      %v1543 = vcombine.high %v1535, %v1535
      %v1544 = vcombine.high %v1542, %v1542
      %1545 = vrot.lane.b32.xlu0 %v1518, 6
      %v1546 = vpop.permute.xlu0 %1545
      %1547 = vrot.lane.b32.xlu0 %v1526, 6
      %v1548 = vpop.permute.xlu0 %1547
      %1549 = vrot.lane.b32.xlu0 %v1525, 6
      %v1550 = vpop.permute.xlu0 %1549
      %1551 = vrot.lane.b32.xlu0 %v1527, 6
      %v1552 = vpop.permute.xlu0 %1551
      %1553 = vrot.lane.b32.xlu0 %v1535, 6
      %v1554 = vpop.permute.xlu0 %1553
      %1555 = vrot.lane.b32.xlu0 %v1543, 6
      %v1556 = vpop.permute.xlu0 %1555
      %1557 = vrot.lane.b32.xlu0 %v1542, 6
      %v1558 = vpop.permute.xlu0 %1557
      %1559 = vrot.lane.b32.xlu0 %v1544, 6
      %v1560 = vpop.permute.xlu0 %1559
      %vm1561 = vcmask 48128
      %v1562 = vsel %vm1561, %v1546, %v1548
      %v1563 = vsel %vm1561, %v1548, %v1550
      %v1564 = vsel %vm1561, %v1550, %v1552
      %v1565 = vsel %vm1561, %v1552, %v1554
      %v1566 = vsel %vm1561, %v1554, %v1556
      %v1567 = vsel %vm1561, %v1556, %v1558
      %v1568 = vsel %vm1561, %v1558, %v1560
      %1576 = vst [vmem:[#allocation2 + $0xe0] sm:$0xc] %v1562
      %1577 = vst [vmem:[#allocation2 + $0xe8] sm:$0xc] %v1563
      %1578 = vst [vmem:[#allocation2 + $0xf0] sm:$0xc] %v1564
      %1579 = vst [vmem:[#allocation2 + $0xf8] sm:$0xc] %v1565
      %1580 = vst [vmem:[#allocation2 + $0x100] sm:$0xc] %v1566
      %1581 = vst [vmem:[#allocation2 + $0x108] sm:$0xc] %v1567
      %1582 = vst [vmem:[#allocation2 + $0x110] sm:$0xc] %v1568
      %v1583 = vld [vmem:[%s219 + $0x2] sm:$0xff]
      %v1584 = vld [vmem:[%s219 + $0xa] sm:$0xff]
      %v1587 = vcombine.high %v1583, %v1583
      %v1589 = vunpack.c.l.s4 1983009808
      %v1590 = vunpack.c.0.s8 %v1589
      %v1591 = vlaneseq
      %v1592 = vshrl.u32 %v1591, 7
      %v1593 = vsub.s32 %v1590, %v1592
      %v1594 = vrot.slane %v1583, %v1593
      %v1596 = vunpack.c.l.s4 1983009808
      %v1597 = vunpack.c.0.s8 %v1596
      %v1598 = vlaneseq
      %v1599 = vshrl.u32 %v1598, 7
      %v1600 = vsub.s32 %v1597, %v1599
      %v1601 = vrot.slane %v1587, %v1600
      %v1602 = vcombine.low %v1594, %v1594
      %v1603 = vcombine.low %v1601, %v1601
      %v1604 = vcombine.high %v1584, %v1584
      %v1606 = vunpack.c.l.s4 1983009808
      %v1607 = vunpack.c.0.s8 %v1606
      %v1608 = vlaneseq
      %v1609 = vshrl.u32 %v1608, 7
      %v1610 = vsub.s32 %v1607, %v1609
      %v1611 = vrot.slane %v1584, %v1610
      %v1613 = vunpack.c.l.s4 1983009808
      %v1614 = vunpack.c.0.s8 %v1613
      %v1615 = vlaneseq
      %v1616 = vshrl.u32 %v1615, 7
      %v1617 = vsub.s32 %v1614, %v1616
      %v1618 = vrot.slane %v1604, %v1617
      %v1619 = vcombine.low %v1611, %v1611
      %v1620 = vcombine.low %v1618, %v1618
      %1621 = vrot.lane.b32.xlu0 %v1602, 56
      %v1622 = vpop.permute.xlu0 %1621
      %1623 = vrot.lane.b32.xlu0 %v1594, 56
      %v1624 = vpop.permute.xlu0 %1623
      %1625 = vrot.lane.b32.xlu0 %v1603, 56
      %v1626 = vpop.permute.xlu0 %1625
      %1627 = vrot.lane.b32.xlu0 %v1601, 56
      %v1628 = vpop.permute.xlu0 %1627
      %1629 = vrot.lane.b32.xlu0 %v1619, 56
      %v1630 = vpop.permute.xlu0 %1629
      %1631 = vrot.lane.b32.xlu0 %v1611, 56
      %v1632 = vpop.permute.xlu0 %1631
      %1633 = vrot.lane.b32.xlu0 %v1620, 56
      %v1634 = vpop.permute.xlu0 %1633
      %1635 = vrot.lane.b32.xlu0 %v1618, 56
      %v1636 = vpop.permute.xlu0 %1635
      %vm1637 = vcmask 457728
      %v1638 = vsel %vm1637, %v1622, %v1624
      %v1639 = vsel %vm1637, %v1624, %v1626
      %v1640 = vsel %vm1637, %v1626, %v1628
      %v1641 = vsel %vm1637, %v1628, %v1630
      %v1642 = vsel %vm1637, %v1630, %v1632
      %v1643 = vsel %vm1637, %v1632, %v1634
      %v1644 = vsel %vm1637, %v1634, %v1636
      %1652 = vst [vmem:[#allocation2 + $0xe0] sm:$0x30] %v1638
      %1653 = vst [vmem:[#allocation2 + $0xe8] sm:$0x30] %v1639
      %1654 = vst [vmem:[#allocation2 + $0xf0] sm:$0x30] %v1640
      %1655 = vst [vmem:[#allocation2 + $0xf8] sm:$0x30] %v1641
      %1656 = vst [vmem:[#allocation2 + $0x100] sm:$0x30] %v1642
      %1657 = vst [vmem:[#allocation2 + $0x108] sm:$0x30] %v1643
      %1658 = vst [vmem:[#allocation2 + $0x110] sm:$0x30] %v1644
      %v1659 = vld [vmem:[%s219 + $0x2] sm:$0xff]
      %v1660 = vld [vmem:[%s219 + $0xa] sm:$0xff]
      %v1663 = vcombine.low %v1659, %v1659
      %v1665 = vunpack.c.l.s4 1983009808
      %v1666 = vunpack.c.0.s8 %v1665
      %v1667 = vlaneseq
      %v1668 = vshrl.u32 %v1667, 7
      %v1669 = vsub.s32 %v1666, %v1668
      %v1670 = vrot.slane %v1663, %v1669
      %v1672 = vunpack.c.l.s4 1983009808
      %v1673 = vunpack.c.0.s8 %v1672
      %v1674 = vlaneseq
      %v1675 = vshrl.u32 %v1674, 7
      %v1676 = vsub.s32 %v1673, %v1675
      %v1677 = vrot.slane %v1659, %v1676
      %v1678 = vcombine.low %v1670, %v1670
      %v1679 = vcombine.low %v1677, %v1677
      %v1680 = vcombine.low %v1660, %v1660
      %v1682 = vunpack.c.l.s4 1983009808
      %v1683 = vunpack.c.0.s8 %v1682
      %v1684 = vlaneseq
      %v1685 = vshrl.u32 %v1684, 7
      %v1686 = vsub.s32 %v1683, %v1685
      %v1687 = vrot.slane %v1680, %v1686
      %v1689 = vunpack.c.l.s4 1983009808
      %v1690 = vunpack.c.0.s8 %v1689
      %v1691 = vlaneseq
      %v1692 = vshrl.u32 %v1691, 7
      %v1693 = vsub.s32 %v1690, %v1692
      %v1694 = vrot.slane %v1660, %v1693
      %v1695 = vcombine.low %v1687, %v1687
      %v1696 = vcombine.low %v1694, %v1694
      %1697 = vrot.lane.b32.xlu0 %v1678, 55
      %v1698 = vpop.permute.xlu0 %1697
      %1699 = vrot.lane.b32.xlu0 %v1670, 55
      %v1700 = vpop.permute.xlu0 %1699
      %1701 = vrot.lane.b32.xlu0 %v1679, 55
      %v1702 = vpop.permute.xlu0 %1701
      %1703 = vrot.lane.b32.xlu0 %v1677, 55
      %v1704 = vpop.permute.xlu0 %1703
      %1705 = vrot.lane.b32.xlu0 %v1695, 55
      %v1706 = vpop.permute.xlu0 %1705
      %1707 = vrot.lane.b32.xlu0 %v1687, 55
      %v1708 = vpop.permute.xlu0 %1707
      %1709 = vrot.lane.b32.xlu0 %v1696, 55
      %v1710 = vpop.permute.xlu0 %1709
      %1711 = vrot.lane.b32.xlu0 %v1694, 55
      %v1712 = vpop.permute.xlu0 %1711
      %vm1713 = vcmask 449536
      %v1714 = vsel %vm1713, %v1698, %v1700
      %v1715 = vsel %vm1713, %v1700, %v1702
      %v1716 = vsel %vm1713, %v1702, %v1704
      %v1717 = vsel %vm1713, %v1704, %v1706
      %v1718 = vsel %vm1713, %v1706, %v1708
      %v1719 = vsel %vm1713, %v1708, %v1710
      %v1720 = vsel %vm1713, %v1710, %v1712
      %1728 = vst [vmem:[#allocation2 + $0xe0] sm:$0xc0] %v1714
      %1729 = vst [vmem:[#allocation2 + $0xe8] sm:$0xc0] %v1715
      %1730 = vst [vmem:[#allocation2 + $0xf0] sm:$0xc0] %v1716
      %1731 = vst [vmem:[#allocation2 + $0xf8] sm:$0xc0] %v1717
      %1732 = vst [vmem:[#allocation2 + $0x100] sm:$0xc0] %v1718
      %1733 = vst [vmem:[#allocation2 + $0x108] sm:$0xc0] %v1719
      %1734 = vst [vmem:[#allocation2 + $0x110] sm:$0xc0] %v1720
      %v1735 = vld [vmem:[%s219 + $0x2] sm:$0xff]
      %v1736 = vld [vmem:[%s219 + $0xa] sm:$0xff]
      %v1739 = vcombine.high %v1735, %v1735
      %v1741 = vunpack.c.l.s4 1983009808
      %v1742 = vunpack.c.0.s8 %v1741
      %v1743 = vlaneseq
      %v1744 = vshrl.u32 %v1743, 7
      %v1745 = vsub.s32 %v1742, %v1744
      %v1746 = vrot.slane %v1735, %v1745
      %v1748 = vunpack.c.l.s4 1983009808
      %v1749 = vunpack.c.0.s8 %v1748
      %v1750 = vlaneseq
      %v1751 = vshrl.u32 %v1750, 7
      %v1752 = vsub.s32 %v1749, %v1751
      %v1753 = vrot.slane %v1739, %v1752
      %v1754 = vcombine.high %v1746, %v1746
      %v1755 = vcombine.high %v1753, %v1753
      %v1756 = vcombine.high %v1736, %v1736
      %v1758 = vunpack.c.l.s4 1983009808
      %v1759 = vunpack.c.0.s8 %v1758
      %v1760 = vlaneseq
      %v1761 = vshrl.u32 %v1760, 7
      %v1762 = vsub.s32 %v1759, %v1761
      %v1763 = vrot.slane %v1736, %v1762
      %v1765 = vunpack.c.l.s4 1983009808
      %v1766 = vunpack.c.0.s8 %v1765
      %v1767 = vlaneseq
      %v1768 = vshrl.u32 %v1767, 7
      %v1769 = vsub.s32 %v1766, %v1768
      %v1770 = vrot.slane %v1756, %v1769
      %v1771 = vcombine.high %v1763, %v1763
      %v1772 = vcombine.high %v1770, %v1770
      %1773 = vrot.lane.b32.xlu0 %v1746, 54
      %v1774 = vpop.permute.xlu0 %1773
      %1775 = vrot.lane.b32.xlu0 %v1754, 54
      %v1776 = vpop.permute.xlu0 %1775
      %1777 = vrot.lane.b32.xlu0 %v1753, 54
      %v1778 = vpop.permute.xlu0 %1777
      %1779 = vrot.lane.b32.xlu0 %v1755, 54
      %v1780 = vpop.permute.xlu0 %1779
      %1781 = vrot.lane.b32.xlu0 %v1763, 54
      %v1782 = vpop.permute.xlu0 %1781
      %1783 = vrot.lane.b32.xlu0 %v1771, 54
      %v1784 = vpop.permute.xlu0 %1783
      %1785 = vrot.lane.b32.xlu0 %v1770, 54
      %v1786 = vpop.permute.xlu0 %1785
      %1787 = vrot.lane.b32.xlu0 %v1772, 54
      %v1788 = vpop.permute.xlu0 %1787
      %vm1789 = vcmask 441344
      %v1790 = vsel %vm1789, %v1774, %v1776
      %v1791 = vsel %vm1789, %v1776, %v1778
      %v1792 = vsel %vm1789, %v1778, %v1780
      %v1793 = vsel %vm1789, %v1780, %v1782
      %v1794 = vsel %vm1789, %v1782, %v1784
      %v1795 = vsel %vm1789, %v1784, %v1786
      %v1796 = vsel %vm1789, %v1786, %v1788
      %1804 = vst [vmem:[#allocation2 + $0x118] sm:$0x3] %v1790
      %1805 = vst [vmem:[#allocation2 + $0x120] sm:$0x3] %v1791
      %1806 = vst [vmem:[#allocation2 + $0x128] sm:$0x3] %v1792
      %1807 = vst [vmem:[#allocation2 + $0x130] sm:$0x3] %v1793
      %1808 = vst [vmem:[#allocation2 + $0x138] sm:$0x3] %v1794
      %1809 = vst [vmem:[#allocation2 + $0x140] sm:$0x3] %v1795
      %1810 = vst [vmem:[#allocation2 + $0x148] sm:$0x3] %v1796
      %v1811 = vld [vmem:[%s219 + $0x2] sm:$0xff]
      %v1812 = vld [vmem:[%s219 + $0xa] sm:$0xff]
      %v1815 = vcombine.low %v1811, %v1811
      %v1817 = vunpack.c.l.s4 1983009808
      %v1818 = vunpack.c.0.s8 %v1817
      %v1819 = vlaneseq
      %v1820 = vshrl.u32 %v1819, 7
      %v1821 = vsub.s32 %v1818, %v1820
      %v1822 = vrot.slane %v1815, %v1821
      %v1824 = vunpack.c.l.s4 1983009808
      %v1825 = vunpack.c.0.s8 %v1824
      %v1826 = vlaneseq
      %v1827 = vshrl.u32 %v1826, 7
      %v1828 = vsub.s32 %v1825, %v1827
      %v1829 = vrot.slane %v1811, %v1828
      %v1830 = vcombine.high %v1822, %v1822
      %v1831 = vcombine.high %v1829, %v1829
      %v1832 = vcombine.low %v1812, %v1812
      %v1834 = vunpack.c.l.s4 1983009808
      %v1835 = vunpack.c.0.s8 %v1834
      %v1836 = vlaneseq
      %v1837 = vshrl.u32 %v1836, 7
      %v1838 = vsub.s32 %v1835, %v1837
      %v1839 = vrot.slane %v1832, %v1838
      %v1841 = vunpack.c.l.s4 1983009808
      %v1842 = vunpack.c.0.s8 %v1841
      %v1843 = vlaneseq
      %v1844 = vshrl.u32 %v1843, 7
      %v1845 = vsub.s32 %v1842, %v1844
      %v1846 = vrot.slane %v1812, %v1845
      %v1847 = vcombine.high %v1839, %v1839
      %v1848 = vcombine.high %v1846, %v1846
      %1849 = vrot.lane.b32.xlu0 %v1822, 46
      %v1850 = vpop.permute.xlu0 %1849
      %1851 = vrot.lane.b32.xlu0 %v1830, 46
      %v1852 = vpop.permute.xlu0 %1851
      %1853 = vrot.lane.b32.xlu0 %v1829, 46
      %v1854 = vpop.permute.xlu0 %1853
      %1855 = vrot.lane.b32.xlu0 %v1831, 46
      %v1856 = vpop.permute.xlu0 %1855
      %1857 = vrot.lane.b32.xlu0 %v1839, 46
      %v1858 = vpop.permute.xlu0 %1857
      %1859 = vrot.lane.b32.xlu0 %v1847, 46
      %v1860 = vpop.permute.xlu0 %1859
      %1861 = vrot.lane.b32.xlu0 %v1846, 46
      %v1862 = vpop.permute.xlu0 %1861
      %1863 = vrot.lane.b32.xlu0 %v1848, 46
      %v1864 = vpop.permute.xlu0 %1863
      %vm1865 = vcmask 375808
      %v1866 = vsel %vm1865, %v1850, %v1852
      %v1867 = vsel %vm1865, %v1852, %v1854
      %v1868 = vsel %vm1865, %v1854, %v1856
      %v1869 = vsel %vm1865, %v1856, %v1858
      %v1870 = vsel %vm1865, %v1858, %v1860
      %v1871 = vsel %vm1865, %v1860, %v1862
      %v1872 = vsel %vm1865, %v1862, %v1864
      %1880 = vst [vmem:[#allocation2 + $0x118] sm:$0xc] %v1866
      %1881 = vst [vmem:[#allocation2 + $0x120] sm:$0xc] %v1867
      %1882 = vst [vmem:[#allocation2 + $0x128] sm:$0xc] %v1868
      %1883 = vst [vmem:[#allocation2 + $0x130] sm:$0xc] %v1869
      %1884 = vst [vmem:[#allocation2 + $0x138] sm:$0xc] %v1870
      %1885 = vst [vmem:[#allocation2 + $0x140] sm:$0xc] %v1871
      %1886 = vst [vmem:[#allocation2 + $0x148] sm:$0xc] %v1872
      %v1887 = vld [vmem:[%s219 + $0x2] sm:$0xff]
      %v1888 = vld [vmem:[%s219 + $0xa] sm:$0xff]
      %v1891 = vcombine.high %v1887, %v1887
      %v1893 = vunpack.c.l.s4 1983009808
      %v1894 = vunpack.c.0.s8 %v1893
      %v1895 = vlaneseq
      %v1896 = vshrl.u32 %v1895, 7
      %v1897 = vsub.s32 %v1894, %v1896
      %v1898 = vrot.slane %v1887, %v1897
      %v1900 = vunpack.c.l.s4 1983009808
      %v1901 = vunpack.c.0.s8 %v1900
      %v1902 = vlaneseq
      %v1903 = vshrl.u32 %v1902, 7
      %v1904 = vsub.s32 %v1901, %v1903
      %v1905 = vrot.slane %v1891, %v1904
      %v1906 = vcombine.low %v1898, %v1898
      %v1907 = vcombine.low %v1905, %v1905
      %v1908 = vcombine.high %v1888, %v1888
      %v1910 = vunpack.c.l.s4 1983009808
      %v1911 = vunpack.c.0.s8 %v1910
      %v1912 = vlaneseq
      %v1913 = vshrl.u32 %v1912, 7
      %v1914 = vsub.s32 %v1911, %v1913
      %v1915 = vrot.slane %v1888, %v1914
      %v1917 = vunpack.c.l.s4 1983009808
      %v1918 = vunpack.c.0.s8 %v1917
      %v1919 = vlaneseq
      %v1920 = vshrl.u32 %v1919, 7
      %v1921 = vsub.s32 %v1918, %v1920
      %v1922 = vrot.slane %v1908, %v1921
      %v1923 = vcombine.low %v1915, %v1915
      %v1924 = vcombine.low %v1922, %v1922
      %1925 = vrot.lane.b32.xlu0 %v1906, 45
      %v1926 = vpop.permute.xlu0 %1925
      %1927 = vrot.lane.b32.xlu0 %v1898, 45
      %v1928 = vpop.permute.xlu0 %1927
      %1929 = vrot.lane.b32.xlu0 %v1907, 45
      %v1930 = vpop.permute.xlu0 %1929
      %1931 = vrot.lane.b32.xlu0 %v1905, 45
      %v1932 = vpop.permute.xlu0 %1931
      %1933 = vrot.lane.b32.xlu0 %v1923, 45
      %v1934 = vpop.permute.xlu0 %1933
      %1935 = vrot.lane.b32.xlu0 %v1915, 45
      %v1936 = vpop.permute.xlu0 %1935
      %1937 = vrot.lane.b32.xlu0 %v1924, 45
      %v1938 = vpop.permute.xlu0 %1937
      %1939 = vrot.lane.b32.xlu0 %v1922, 45
      %v1940 = vpop.permute.xlu0 %1939
      %vm1941 = vcmask 367616
      %v1942 = vsel %vm1941, %v1926, %v1928
      %v1943 = vsel %vm1941, %v1928, %v1930
      %v1944 = vsel %vm1941, %v1930, %v1932
      %v1945 = vsel %vm1941, %v1932, %v1934
      %v1946 = vsel %vm1941, %v1934, %v1936
      %v1947 = vsel %vm1941, %v1936, %v1938
      %v1948 = vsel %vm1941, %v1938, %v1940
      %1956 = vst [vmem:[#allocation2 + $0x118] sm:$0x30] %v1942
      %1957 = vst [vmem:[#allocation2 + $0x120] sm:$0x30] %v1943
      %1958 = vst [vmem:[#allocation2 + $0x128] sm:$0x30] %v1944
      %1959 = vst [vmem:[#allocation2 + $0x130] sm:$0x30] %v1945
      %1960 = vst [vmem:[#allocation2 + $0x138] sm:$0x30] %v1946
      %1961 = vst [vmem:[#allocation2 + $0x140] sm:$0x30] %v1947
      %1962 = vst [vmem:[#allocation2 + $0x148] sm:$0x30] %v1948
      %v1963 = vld [vmem:[%s219 + $0x2] sm:$0xff]
      %v1964 = vld [vmem:[%s219 + $0xa] sm:$0xff]
      %v1967 = vcombine.low %v1963, %v1963
      %v1969 = vunpack.c.l.s4 1983009808
      %v1970 = vunpack.c.0.s8 %v1969
      %v1971 = vlaneseq
      %v1972 = vshrl.u32 %v1971, 7
      %v1973 = vsub.s32 %v1970, %v1972
      %v1974 = vrot.slane %v1967, %v1973
      %v1976 = vunpack.c.l.s4 1983009808
      %v1977 = vunpack.c.0.s8 %v1976
      %v1978 = vlaneseq
      %v1979 = vshrl.u32 %v1978, 7
      %v1980 = vsub.s32 %v1977, %v1979
      %v1981 = vrot.slane %v1963, %v1980
      %v1982 = vcombine.low %v1974, %v1974
      %v1983 = vcombine.low %v1981, %v1981
      %v1984 = vcombine.low %v1964, %v1964
      %v1986 = vunpack.c.l.s4 1983009808
      %v1987 = vunpack.c.0.s8 %v1986
      %v1988 = vlaneseq
      %v1989 = vshrl.u32 %v1988, 7
      %v1990 = vsub.s32 %v1987, %v1989
      %v1991 = vrot.slane %v1984, %v1990
      %v1993 = vunpack.c.l.s4 1983009808
      %v1994 = vunpack.c.0.s8 %v1993
      %v1995 = vlaneseq
      %v1996 = vshrl.u32 %v1995, 7
      %v1997 = vsub.s32 %v1994, %v1996
      %v1998 = vrot.slane %v1964, %v1997
      %v1999 = vcombine.low %v1991, %v1991
      %v2000 = vcombine.low %v1998, %v1998
      %2001 = vrot.lane.b32.xlu0 %v1982, 44
      %v2002 = vpop.permute.xlu0 %2001
      %2003 = vrot.lane.b32.xlu0 %v1974, 44
      %v2004 = vpop.permute.xlu0 %2003
      %2005 = vrot.lane.b32.xlu0 %v1983, 44
      %v2006 = vpop.permute.xlu0 %2005
      %2007 = vrot.lane.b32.xlu0 %v1981, 44
      %v2008 = vpop.permute.xlu0 %2007
      %2009 = vrot.lane.b32.xlu0 %v1999, 44
      %v2010 = vpop.permute.xlu0 %2009
      %2011 = vrot.lane.b32.xlu0 %v1991, 44
      %v2012 = vpop.permute.xlu0 %2011
      %2013 = vrot.lane.b32.xlu0 %v2000, 44
      %v2014 = vpop.permute.xlu0 %2013
      %2015 = vrot.lane.b32.xlu0 %v1998, 44
      %v2016 = vpop.permute.xlu0 %2015
      %vm2017 = vcmask 359424
      %v2018 = vsel %vm2017, %v2002, %v2004
      %v2019 = vsel %vm2017, %v2004, %v2006
      %v2020 = vsel %vm2017, %v2006, %v2008
      %v2021 = vsel %vm2017, %v2008, %v2010
      %v2022 = vsel %vm2017, %v2010, %v2012
      %v2023 = vsel %vm2017, %v2012, %v2014
      %v2024 = vsel %vm2017, %v2014, %v2016
      %2032 = vst [vmem:[#allocation2 + $0x118] sm:$0xc0] %v2018
      %2033 = vst [vmem:[#allocation2 + $0x120] sm:$0xc0] %v2019
      %2034 = vst [vmem:[#allocation2 + $0x128] sm:$0xc0] %v2020
      %2035 = vst [vmem:[#allocation2 + $0x130] sm:$0xc0] %v2021
      %2036 = vst [vmem:[#allocation2 + $0x138] sm:$0xc0] %v2022
      %2037 = vst [vmem:[#allocation2 + $0x140] sm:$0xc0] %v2023
      %2038 = vst [vmem:[#allocation2 + $0x148] sm:$0xc0] %v2024
      %v2039 = vld [vmem:[%s219 + $0x2] sm:$0xff]
      %v2040 = vld [vmem:[%s219 + $0xa] sm:$0xff]
      %v2043 = vcombine.high %v2039, %v2039
      %v2045 = vunpack.c.l.s4 1983009808
      %v2046 = vunpack.c.0.s8 %v2045
      %v2047 = vlaneseq
      %v2048 = vshrl.u32 %v2047, 7
      %v2049 = vsub.s32 %v2046, %v2048
      %v2050 = vrot.slane %v2039, %v2049
      %v2052 = vunpack.c.l.s4 1983009808
      %v2053 = vunpack.c.0.s8 %v2052
      %v2054 = vlaneseq
      %v2055 = vshrl.u32 %v2054, 7
      %v2056 = vsub.s32 %v2053, %v2055
      %v2057 = vrot.slane %v2043, %v2056
      %v2058 = vcombine.high %v2050, %v2050
      %v2059 = vcombine.high %v2057, %v2057
      %v2060 = vcombine.high %v2040, %v2040
      %v2062 = vunpack.c.l.s4 1983009808
      %v2063 = vunpack.c.0.s8 %v2062
      %v2064 = vlaneseq
      %v2065 = vshrl.u32 %v2064, 7
      %v2066 = vsub.s32 %v2063, %v2065
      %v2067 = vrot.slane %v2040, %v2066
      %v2069 = vunpack.c.l.s4 1983009808
      %v2070 = vunpack.c.0.s8 %v2069
      %v2071 = vlaneseq
      %v2072 = vshrl.u32 %v2071, 7
      %v2073 = vsub.s32 %v2070, %v2072
      %v2074 = vrot.slane %v2060, %v2073
      %v2075 = vcombine.high %v2067, %v2067
      %v2076 = vcombine.high %v2074, %v2074
      %2077 = vrot.lane.b32.xlu0 %v2050, 36
      %v2078 = vpop.permute.xlu0 %2077
      %2079 = vrot.lane.b32.xlu0 %v2058, 36
      %v2080 = vpop.permute.xlu0 %2079
      %2081 = vrot.lane.b32.xlu0 %v2057, 36
      %v2082 = vpop.permute.xlu0 %2081
      %2083 = vrot.lane.b32.xlu0 %v2059, 36
      %v2084 = vpop.permute.xlu0 %2083
      %2085 = vrot.lane.b32.xlu0 %v2067, 36
      %v2086 = vpop.permute.xlu0 %2085
      %2087 = vrot.lane.b32.xlu0 %v2075, 36
      %v2088 = vpop.permute.xlu0 %2087
      %2089 = vrot.lane.b32.xlu0 %v2074, 36
      %v2090 = vpop.permute.xlu0 %2089
      %2091 = vrot.lane.b32.xlu0 %v2076, 36
      %v2092 = vpop.permute.xlu0 %2091
      %vm2093 = vcmask 293888
      %v2094 = vsel %vm2093, %v2078, %v2080
      %v2095 = vsel %vm2093, %v2080, %v2082
      %v2096 = vsel %vm2093, %v2082, %v2084
      %v2097 = vsel %vm2093, %v2084, %v2086
      %v2098 = vsel %vm2093, %v2086, %v2088
      %v2099 = vsel %vm2093, %v2088, %v2090
      %v2100 = vsel %vm2093, %v2090, %v2092
      %2108 = vst [vmem:[#allocation2 + $0x150] sm:$0x3] %v2094
      %2109 = vst [vmem:[#allocation2 + $0x158] sm:$0x3] %v2095
      %2110 = vst [vmem:[#allocation2 + $0x160] sm:$0x3] %v2096
      %2111 = vst [vmem:[#allocation2 + $0x168] sm:$0x3] %v2097
      %2112 = vst [vmem:[#allocation2 + $0x170] sm:$0x3] %v2098
      %2113 = vst [vmem:[#allocation2 + $0x178] sm:$0x3] %v2099
      %2114 = vst [vmem:[#allocation2 + $0x180] sm:$0x3] %v2100
      %v2115 = vld [vmem:[%s219 + $0x2] sm:$0xff]
      %v2116 = vld [vmem:[%s219 + $0xa] sm:$0xff]
      %v2119 = vcombine.low %v2115, %v2115
      %v2121 = vunpack.c.l.s4 1983009808
      %v2122 = vunpack.c.0.s8 %v2121
      %v2123 = vlaneseq
      %v2124 = vshrl.u32 %v2123, 7
      %v2125 = vsub.s32 %v2122, %v2124
      %v2126 = vrot.slane %v2119, %v2125
      %v2128 = vunpack.c.l.s4 1983009808
      %v2129 = vunpack.c.0.s8 %v2128
      %v2130 = vlaneseq
      %v2131 = vshrl.u32 %v2130, 7
      %v2132 = vsub.s32 %v2129, %v2131
      %v2133 = vrot.slane %v2115, %v2132
      %v2134 = vcombine.high %v2126, %v2126
      %v2135 = vcombine.high %v2133, %v2133
      %v2136 = vcombine.low %v2116, %v2116
      %v2138 = vunpack.c.l.s4 1983009808
      %v2139 = vunpack.c.0.s8 %v2138
      %v2140 = vlaneseq
      %v2141 = vshrl.u32 %v2140, 7
      %v2142 = vsub.s32 %v2139, %v2141
      %v2143 = vrot.slane %v2136, %v2142
      %v2145 = vunpack.c.l.s4 1983009808
      %v2146 = vunpack.c.0.s8 %v2145
      %v2147 = vlaneseq
      %v2148 = vshrl.u32 %v2147, 7
      %v2149 = vsub.s32 %v2146, %v2148
      %v2150 = vrot.slane %v2116, %v2149
      %v2151 = vcombine.high %v2143, %v2143
      %v2152 = vcombine.high %v2150, %v2150
      %2153 = vrot.lane.b32.xlu0 %v2126, 35
      %v2154 = vpop.permute.xlu0 %2153
      %2155 = vrot.lane.b32.xlu0 %v2134, 35
      %v2156 = vpop.permute.xlu0 %2155
      %2157 = vrot.lane.b32.xlu0 %v2133, 35
      %v2158 = vpop.permute.xlu0 %2157
      %2159 = vrot.lane.b32.xlu0 %v2135, 35
      %v2160 = vpop.permute.xlu0 %2159
      %2161 = vrot.lane.b32.xlu0 %v2143, 35
      %v2162 = vpop.permute.xlu0 %2161
      %2163 = vrot.lane.b32.xlu0 %v2151, 35
      %v2164 = vpop.permute.xlu0 %2163
      %2165 = vrot.lane.b32.xlu0 %v2150, 35
      %v2166 = vpop.permute.xlu0 %2165
      %2167 = vrot.lane.b32.xlu0 %v2152, 35
      %v2168 = vpop.permute.xlu0 %2167
      %vm2169 = vcmask 285696
      %v2170 = vsel %vm2169, %v2154, %v2156
      %v2171 = vsel %vm2169, %v2156, %v2158
      %v2172 = vsel %vm2169, %v2158, %v2160
      %v2173 = vsel %vm2169, %v2160, %v2162
      %v2174 = vsel %vm2169, %v2162, %v2164
      %v2175 = vsel %vm2169, %v2164, %v2166
      %v2176 = vsel %vm2169, %v2166, %v2168
      %2184 = vst [vmem:[#allocation2 + $0x150] sm:$0xc] %v2170
      %2185 = vst [vmem:[#allocation2 + $0x158] sm:$0xc] %v2171
      %2186 = vst [vmem:[#allocation2 + $0x160] sm:$0xc] %v2172
      %2187 = vst [vmem:[#allocation2 + $0x168] sm:$0xc] %v2173
      %2188 = vst [vmem:[#allocation2 + $0x170] sm:$0xc] %v2174
      %2189 = vst [vmem:[#allocation2 + $0x178] sm:$0xc] %v2175
      %2190 = vst [vmem:[#allocation2 + $0x180] sm:$0xc] %v2176
      %v2191 = vld [vmem:[%s219 + $0x2] sm:$0xff]
      %v2192 = vld [vmem:[%s219 + $0xa] sm:$0xff]
      %v2195 = vcombine.high %v2191, %v2191
      %v2197 = vunpack.c.l.s4 1983009808
      %v2198 = vunpack.c.0.s8 %v2197
      %v2199 = vlaneseq
      %v2200 = vshrl.u32 %v2199, 7
      %v2201 = vsub.s32 %v2198, %v2200
      %v2202 = vrot.slane %v2191, %v2201
      %v2204 = vunpack.c.l.s4 1983009808
      %v2205 = vunpack.c.0.s8 %v2204
      %v2206 = vlaneseq
      %v2207 = vshrl.u32 %v2206, 7
      %v2208 = vsub.s32 %v2205, %v2207
      %v2209 = vrot.slane %v2195, %v2208
      %v2210 = vcombine.low %v2202, %v2202
      %v2211 = vcombine.low %v2209, %v2209
      %v2212 = vcombine.high %v2192, %v2192
      %v2214 = vunpack.c.l.s4 1983009808
      %v2215 = vunpack.c.0.s8 %v2214
      %v2216 = vlaneseq
      %v2217 = vshrl.u32 %v2216, 7
      %v2218 = vsub.s32 %v2215, %v2217
      %v2219 = vrot.slane %v2192, %v2218
      %v2221 = vunpack.c.l.s4 1983009808
      %v2222 = vunpack.c.0.s8 %v2221
      %v2223 = vlaneseq
      %v2224 = vshrl.u32 %v2223, 7
      %v2225 = vsub.s32 %v2222, %v2224
      %v2226 = vrot.slane %v2212, %v2225
      %v2227 = vcombine.low %v2219, %v2219
      %v2228 = vcombine.low %v2226, %v2226
      %2229 = vrot.lane.b32.xlu0 %v2210, 34
      %v2230 = vpop.permute.xlu0 %2229
      %2231 = vrot.lane.b32.xlu0 %v2202, 34
      %v2232 = vpop.permute.xlu0 %2231
      %2233 = vrot.lane.b32.xlu0 %v2211, 34
      %v2234 = vpop.permute.xlu0 %2233
      %2235 = vrot.lane.b32.xlu0 %v2209, 34
      %v2236 = vpop.permute.xlu0 %2235
      %2237 = vrot.lane.b32.xlu0 %v2227, 34
      %v2238 = vpop.permute.xlu0 %2237
      %2239 = vrot.lane.b32.xlu0 %v2219, 34
      %v2240 = vpop.permute.xlu0 %2239
      %2241 = vrot.lane.b32.xlu0 %v2228, 34
      %v2242 = vpop.permute.xlu0 %2241
      %2243 = vrot.lane.b32.xlu0 %v2226, 34
      %v2244 = vpop.permute.xlu0 %2243
      %vm2245 = vcmask 277504
      %v2246 = vsel %vm2245, %v2230, %v2232
      %v2247 = vsel %vm2245, %v2232, %v2234
      %v2248 = vsel %vm2245, %v2234, %v2236
      %v2249 = vsel %vm2245, %v2236, %v2238
      %v2250 = vsel %vm2245, %v2238, %v2240
      %v2251 = vsel %vm2245, %v2240, %v2242
      %v2252 = vsel %vm2245, %v2242, %v2244
      %2260 = vst [vmem:[#allocation2 + $0x150] sm:$0x30] %v2246
      %2261 = vst [vmem:[#allocation2 + $0x158] sm:$0x30] %v2247
      %2262 = vst [vmem:[#allocation2 + $0x160] sm:$0x30] %v2248
      %2263 = vst [vmem:[#allocation2 + $0x168] sm:$0x30] %v2249
      %2264 = vst [vmem:[#allocation2 + $0x170] sm:$0x30] %v2250
      %2265 = vst [vmem:[#allocation2 + $0x178] sm:$0x30] %v2251
      %2266 = vst [vmem:[#allocation2 + $0x180] sm:$0x30] %v2252
      %v2267 = vld [vmem:[%s1] sm:$0xf]
      %v2268 = vld [vmem:[#allocation2] sm:$0xff]
      %v2269 = vld [vmem:[#allocation2 + $0x8] sm:$0xff]
      %v2270 = vld [vmem:[#allocation2 + $0x10] sm:$0xff]
      %v2271 = vld [vmem:[#allocation2 + $0x18] sm:$0xff]
      %v2272 = vld [vmem:[#allocation2 + $0x20] sm:$0xff]
      %v2273 = vld [vmem:[#allocation2 + $0x28] sm:$0xff]
      %v2274 = vld [vmem:[#allocation2 + $0x30] sm:$0xff]
      %v2275 = vld [vmem:[#allocation2 + $0x38] sm:$0xff]
      %v2276 = vld [vmem:[#allocation2 + $0x40] sm:$0xff]
      %v2277 = vld [vmem:[#allocation2 + $0x48] sm:$0xff]
      %v2278 = vld [vmem:[#allocation2 + $0x50] sm:$0xff]
      %v2279 = vld [vmem:[#allocation2 + $0x58] sm:$0xff]
      %v2280 = vld [vmem:[#allocation2 + $0x60] sm:$0xff]
      %v2281 = vld [vmem:[#allocation2 + $0x68] sm:$0xff]
      %v2282 = vld [vmem:[#allocation2 + $0x70] sm:$0xff]
      %v2283 = vld [vmem:[#allocation2 + $0x78] sm:$0xff]
      %v2284 = vld [vmem:[#allocation2 + $0x80] sm:$0xff]
      %v2285 = vld [vmem:[#allocation2 + $0x88] sm:$0xff]
      %v2286 = vld [vmem:[#allocation2 + $0x90] sm:$0xff]
      %v2287 = vld [vmem:[#allocation2 + $0x98] sm:$0xff]
      %v2288 = vld [vmem:[#allocation2 + $0xa0] sm:$0xff]
      %v2289 = vld [vmem:[#allocation2 + $0xa8] sm:$0xff]
      %v2290 = vld [vmem:[#allocation2 + $0xb0] sm:$0xff]
      %v2291 = vld [vmem:[#allocation2 + $0xb8] sm:$0xff]
      %v2292 = vld [vmem:[#allocation2 + $0xc0] sm:$0xff]
      %v2293 = vld [vmem:[#allocation2 + $0xc8] sm:$0xff]
      %v2294 = vld [vmem:[#allocation2 + $0xd0] sm:$0xff]
      %v2295 = vld [vmem:[#allocation2 + $0xd8] sm:$0xff]
      %v2296 = vld [vmem:[#allocation2 + $0xe0] sm:$0xff]
      %v2297 = vld [vmem:[#allocation2 + $0xe8] sm:$0xff]
      %v2298 = vld [vmem:[#allocation2 + $0xf0] sm:$0xff]
      %v2299 = vld [vmem:[#allocation2 + $0xf8] sm:$0xff]
      %v2300 = vld [vmem:[#allocation2 + $0x100] sm:$0xff]
      %v2301 = vld [vmem:[#allocation2 + $0x108] sm:$0xff]
      %v2302 = vld [vmem:[#allocation2 + $0x110] sm:$0xff]
      %v2303 = vld [vmem:[#allocation2 + $0x118] sm:$0xff]
      %v2304 = vld [vmem:[#allocation2 + $0x120] sm:$0xff]
      %v2305 = vld [vmem:[#allocation2 + $0x128] sm:$0xff]
      %v2306 = vld [vmem:[#allocation2 + $0x130] sm:$0xff]
      %v2307 = vld [vmem:[#allocation2 + $0x138] sm:$0xff]
      %v2308 = vld [vmem:[#allocation2 + $0x140] sm:$0xff]
      %v2309 = vld [vmem:[#allocation2 + $0x148] sm:$0xff]
      %v2310 = vld [vmem:[#allocation2 + $0x150] sm:$0xff]
      %v2311 = vld [vmem:[#allocation2 + $0x158] sm:$0xff]
      %v2312 = vld [vmem:[#allocation2 + $0x160] sm:$0xff]
      %v2313 = vld [vmem:[#allocation2 + $0x168] sm:$0xff]
      %v2314 = vld [vmem:[#allocation2 + $0x170] sm:$0xff]
      %v2315 = vld [vmem:[#allocation2 + $0x178] sm:$0xff]
      %v2316 = vld [vmem:[#allocation2 + $0x180] sm:$0xff]
      %v2317 = vld [vmem:[#allocation2 + $0x188] sm:$0xff]
      %v2318 = vld [vmem:[#allocation2 + $0x190] sm:$0xff]
      %v2319 = vld [vmem:[#allocation2 + $0x198] sm:$0xff]
      %v2320 = vld [vmem:[#allocation2 + $0x1a0] sm:$0xff]
      %v2321 = vld [vmem:[#allocation2 + $0x1a8] sm:$0xff]
      %v2322 = vld [vmem:[#allocation2 + $0x1b0] sm:$0xff]
      %v2323 = vld [vmem:[#allocation2 + $0x1b8] sm:$0xff]
      %2324 = vmatprep.subr.bf16.mxu0 %v2269
      %2325 = vmatpush1.bf16.msra.mxu0 %v2268
      %2326 = vmatprep.subr.bf16.mxu0 %v2276
      %2327 = vmatpush1.bf16.msra.mxu0 %v2275
      %2328 = vmatprep.subr.bf16.mxu0 %v2283
      %2329 = vmatpush1.bf16.msra.mxu0 %v2282
      %2330 = vmatprep.subr.bf16.mxu0 %v2290
      %2331 = vmatpush1.bf16.msra.mxu0 %v2289
      %2332 = vmatprep.subr.bf16.mxu0 %v2297
      %2333 = vmatpush1.bf16.msra.mxu0 %v2296
      %2334 = vmatprep.subr.bf16.mxu0 %v2304
      %2335 = vmatpush1.bf16.msra.mxu0 %v2303
      %2336 = vmatprep.subr.bf16.mxu0 %v2311
      %2337 = vmatpush1.bf16.msra.mxu0 %v2310
      %2338 = vmatprep.subr.bf16.mxu0 %v2318
      %2339 = vmatpush1.bf16.msra.mxu0 %v2317
      %2340 = vmatprep.subr.bf16.mxu0 0
      %2341 = vmatpush1.bf16.msra.mxu0 0
      %2342 = vmatprep.subr.bf16.mxu0 0
      %2343 = vmatpush1.bf16.msra.mxu0 0
      %2344 = vmatprep.subr.bf16.mxu0 0
      %2345 = vmatpush1.bf16.msra.mxu0 0
      %2346 = vmatprep.subr.bf16.mxu0 0
      %2347 = vmatpush1.bf16.msra.mxu0 0
      %2348 = vmatprep.subr.bf16.mxu0 0
      %2349 = vmatpush1.bf16.msra.mxu0 0
      %2350 = vmatprep.subr.bf16.mxu0 0
      %2351 = vmatpush1.bf16.msra.mxu0 0
      %2352 = vmatprep.subr.bf16.mxu0 0
      %2353 = vmatpush1.bf16.msra.mxu0 0
      %2354 = vmatprep.subr.bf16.mxu0 0
      %2355 = vmatpush1.bf16.msra.mxu0 0
      %2356 = vmatprep.mubr.bf16.mxu0 0
      %2357 = vmatmul.mubr.bf16.gmra.mrb[0].mxu0 %v2267
      %v2358 = vpop.f32.mrb[0].mxu0
      %v2359 = vadd.f32 0.0, %v2358
      %v2360 = vpop.f32.mrb[0].mxu0
      %v2361 = vadd.f32 0.0, %v2360
      %v2362 = vpop.f32.mrb[0].mxu0
      %v2363 = vpop.f32.mrb[0].mxu0
      %2364 = vdwg.mxu0
      %2365 = vmatprep.subr.bf16.mxu0 %v2271
      %2366 = vmatpush1.bf16.msra.mxu0 %v2270
      %2367 = vmatprep.subr.bf16.mxu0 %v2278
      %2368 = vmatpush1.bf16.msra.mxu0 %v2277
      %2369 = vmatprep.subr.bf16.mxu0 %v2285
      %2370 = vmatpush1.bf16.msra.mxu0 %v2284
      %2371 = vmatprep.subr.bf16.mxu0 %v2292
      %2372 = vmatpush1.bf16.msra.mxu0 %v2291
      %2373 = vmatprep.subr.bf16.mxu0 %v2299
      %2374 = vmatpush1.bf16.msra.mxu0 %v2298
      %2375 = vmatprep.subr.bf16.mxu0 %v2306
      %2376 = vmatpush1.bf16.msra.mxu0 %v2305
      %2377 = vmatprep.subr.bf16.mxu0 %v2313
      %2378 = vmatpush1.bf16.msra.mxu0 %v2312
      %2379 = vmatprep.subr.bf16.mxu0 %v2320
      %2380 = vmatpush1.bf16.msra.mxu0 %v2319
      %2381 = vmatprep.subr.bf16.mxu0 0
      %2382 = vmatpush1.bf16.msra.mxu0 0
      %2383 = vmatprep.subr.bf16.mxu0 0
      %2384 = vmatpush1.bf16.msra.mxu0 0
      %2385 = vmatprep.subr.bf16.mxu0 0
      %2386 = vmatpush1.bf16.msra.mxu0 0
      %2387 = vmatprep.subr.bf16.mxu0 0
      %2388 = vmatpush1.bf16.msra.mxu0 0
      %2389 = vmatprep.subr.bf16.mxu0 0
      %2390 = vmatpush1.bf16.msra.mxu0 0
      %2391 = vmatprep.subr.bf16.mxu0 0
      %2392 = vmatpush1.bf16.msra.mxu0 0
      %2393 = vmatprep.subr.bf16.mxu0 0
      %2394 = vmatpush1.bf16.msra.mxu0 0
      %2395 = vmatprep.subr.bf16.mxu0 0
      %2396 = vmatpush1.bf16.msra.mxu0 0
      %2397 = vmatprep.mubr.bf16.mxu0 0
      %2398 = vmatmul.mubr.bf16.gmra.mrb[0].mxu0 %v2267
      %v2399 = vpop.f32.mrb[0].mxu0
      %v2400 = vadd.f32 0.0, %v2399
      %v2401 = vpop.f32.mrb[0].mxu0
      %v2402 = vadd.f32 0.0, %v2401
      %v2403 = vpop.f32.mrb[0].mxu0
      %v2404 = vpop.f32.mrb[0].mxu0
      %2405 = vdwg.mxu0
      %2406 = vmatprep.subr.bf16.mxu0 %v2273
      %2407 = vmatpush1.bf16.msra.mxu0 %v2272
      %2408 = vmatprep.subr.bf16.mxu0 %v2280
      %2409 = vmatpush1.bf16.msra.mxu0 %v2279
      %2410 = vmatprep.subr.bf16.mxu0 %v2287
      %2411 = vmatpush1.bf16.msra.mxu0 %v2286
      %2412 = vmatprep.subr.bf16.mxu0 %v2294
      %2413 = vmatpush1.bf16.msra.mxu0 %v2293
      %2414 = vmatprep.subr.bf16.mxu0 %v2301
      %2415 = vmatpush1.bf16.msra.mxu0 %v2300
      %2416 = vmatprep.subr.bf16.mxu0 %v2308
      %2417 = vmatpush1.bf16.msra.mxu0 %v2307
      %2418 = vmatprep.subr.bf16.mxu0 %v2315
      %2419 = vmatpush1.bf16.msra.mxu0 %v2314
      %2420 = vmatprep.subr.bf16.mxu0 %v2322
      %2421 = vmatpush1.bf16.msra.mxu0 %v2321
      %2422 = vmatprep.subr.bf16.mxu0 0
      %2423 = vmatpush1.bf16.msra.mxu0 0
      %2424 = vmatprep.subr.bf16.mxu0 0
      %2425 = vmatpush1.bf16.msra.mxu0 0
      %2426 = vmatprep.subr.bf16.mxu0 0
      %2427 = vmatpush1.bf16.msra.mxu0 0
      %2428 = vmatprep.subr.bf16.mxu0 0
      %2429 = vmatpush1.bf16.msra.mxu0 0
      %2430 = vmatprep.subr.bf16.mxu0 0
      %2431 = vmatpush1.bf16.msra.mxu0 0
      %2432 = vmatprep.subr.bf16.mxu0 0
      %2433 = vmatpush1.bf16.msra.mxu0 0
      %2434 = vmatprep.subr.bf16.mxu0 0
      %2435 = vmatpush1.bf16.msra.mxu0 0
      %2436 = vmatprep.subr.bf16.mxu0 0
      %2437 = vmatpush1.bf16.msra.mxu0 0
      %2438 = vmatprep.mubr.bf16.mxu0 0
      %2439 = vmatmul.mubr.bf16.gmra.mrb[0].mxu0 %v2267
      %v2440 = vpop.f32.mrb[0].mxu0
      %v2441 = vadd.f32 0.0, %v2440
      %v2442 = vpop.f32.mrb[0].mxu0
      %v2443 = vadd.f32 0.0, %v2442
      %v2444 = vpop.f32.mrb[0].mxu0
      %v2445 = vpop.f32.mrb[0].mxu0
      %2446 = vdwg.mxu0
      %2447 = vmatprep.subr.bf16.mxu0 0
      %2448 = vmatpush1.bf16.msra.mxu0 %v2274
      %2449 = vmatprep.subr.bf16.mxu0 0
      %2450 = vmatpush1.bf16.msra.mxu0 %v2281
      %2451 = vmatprep.subr.bf16.mxu0 0
      %2452 = vmatpush1.bf16.msra.mxu0 %v2288
      %2453 = vmatprep.subr.bf16.mxu0 0
      %2454 = vmatpush1.bf16.msra.mxu0 %v2295
      %2455 = vmatprep.subr.bf16.mxu0 0
      %2456 = vmatpush1.bf16.msra.mxu0 %v2302
      %2457 = vmatprep.subr.bf16.mxu0 0
      %2458 = vmatpush1.bf16.msra.mxu0 %v2309
      %2459 = vmatprep.subr.bf16.mxu0 0
      %2460 = vmatpush1.bf16.msra.mxu0 %v2316
      %2461 = vmatprep.subr.bf16.mxu0 0
      %2462 = vmatpush1.bf16.msra.mxu0 %v2323
      %2463 = vmatprep.subr.bf16.mxu0 0
      %2464 = vmatpush1.bf16.msra.mxu0 0
      %2465 = vmatprep.subr.bf16.mxu0 0
      %2466 = vmatpush1.bf16.msra.mxu0 0
      %2467 = vmatprep.subr.bf16.mxu0 0
      %2468 = vmatpush1.bf16.msra.mxu0 0
      %2469 = vmatprep.subr.bf16.mxu0 0
      %2470 = vmatpush1.bf16.msra.mxu0 0
      %2471 = vmatprep.subr.bf16.mxu0 0
      %2472 = vmatpush1.bf16.msra.mxu0 0
      %2473 = vmatprep.subr.bf16.mxu0 0
      %2474 = vmatpush1.bf16.msra.mxu0 0
      %2475 = vmatprep.subr.bf16.mxu0 0
      %2476 = vmatpush1.bf16.msra.mxu0 0
      %2477 = vmatprep.subr.bf16.mxu0 0
      %2478 = vmatpush1.bf16.msra.mxu0 0
      %2479 = vmatprep.mubr.bf16.mxu0 0
      %2480 = vmatmul.mubr.bf16.gmra.mrb[0].mxu0 %v2267
      %v2481 = vpop.f32.mrb[0].mxu0
      %v2482 = vadd.f32 0.0, %v2481
      %v2483 = vpop.f32.mrb[0].mxu0
      %v2484 = vpop.f32.mrb[0].mxu0
      %v2485 = vpop.f32.mrb[0].mxu0
      %2486 = vdwg.mxu0
      %v2487 = vld [vmem:[%s4] sm:$0xff]
      %vm2488 = vcmp.gt.f32.partialorder %v2487, 0.5
      %v2489 = vsel %vm2488, 1, 0
      %v2490 = vlaneseq
      %v2491 = vshrl.u32 %v2490, 7
      %v2492 = vsub.s32 0, %v2491
      %v2493 = vrot.slane %v2489, %v2492
      %v2494 = vlaneseq
      %v2495 = vshrl.u32 %v2494, 7
      %v2496 = vsub.s32 1, %v2495
      %v2497 = vrot.slane %v2489, %v2496
      %v2498 = vlaneseq
      %v2499 = vshrl.u32 %v2498, 7
      %v2500 = vsub.s32 2, %v2499
      %v2501 = vrot.slane %v2489, %v2500
      %v2502 = vlaneseq
      %v2503 = vshrl.u32 %v2502, 7
      %v2504 = vsub.s32 3, %v2503
      %v2505 = vrot.slane %v2489, %v2504
      %v2506 = vlaneseq
      %v2507 = vshrl.u32 %v2506, 7
      %v2508 = vsub.s32 4, %v2507
      %v2509 = vrot.slane %v2489, %v2508
      %v2510 = vlaneseq
      %v2511 = vshrl.u32 %v2510, 7
      %v2512 = vsub.s32 5, %v2511
      %v2513 = vrot.slane %v2489, %v2512
      %v2514 = vlaneseq
      %v2515 = vshrl.u32 %v2514, 7
      %v2516 = vsub.s32 6, %v2515
      %v2517 = vrot.slane %v2489, %v2516
      %vm2518 = vcmp.eq.s32.totalorder %v2493, 1
      %vm2519 = vcmp.eq.s32.totalorder %v2497, 1
      %vm2520 = vcmp.eq.s32.totalorder %v2501, 1
      %vm2521 = vcmp.eq.s32.totalorder %v2505, 1
      %vm2522 = vcmp.eq.s32.totalorder %v2509, 1
      %vm2523 = vcmp.eq.s32.totalorder %v2513, 1
      %vm2524 = vcmp.eq.s32.totalorder %v2517, 1
      %v2525 = vsel %vm2518, %v2359, 0.0
      %v2526 = vsel %vm2519, %v2361, 0.0
      %v2527 = vsel %vm2520, %v2400, 0.0
      %v2528 = vsel %vm2521, %v2402, 0.0
      %v2529 = vsel %vm2522, %v2441, 0.0
      %v2530 = vsel %vm2523, %v2443, 0.0
      %v2531 = vsel %vm2524, %v2482, 0.0
      %vm2532 = vcmask 1043456
      %v2533 = vsel %vm2532, %v2525, 0.0
      %v2534 = vsel %vm2532, %v2526, 0.0
      %v2535 = vadd.f32 %v2533, %v2534
      %v2536 = vsel %vm2532, %v2527, 0.0
      %v2537 = vadd.f32 %v2535, %v2536
      %v2538 = vsel %vm2532, %v2528, 0.0
      %v2539 = vadd.f32 %v2537, %v2538
      %v2540 = vsel %vm2532, %v2529, 0.0
      %v2541 = vadd.f32 %v2539, %v2540
      %v2542 = vsel %vm2532, %v2530, 0.0
      %v2543 = vadd.f32 %v2541, %v2542
      %v2544 = vsel %vm2532, %v2531, 0.0
      %v2545 = vadd.f32 %v2543, %v2544
      %2546 = vadd.xlane.f32.xlu0 %v2545
      %v2547 = vpop.xlane.xlu0 %2546
      %v2548 = vrot.slane %v2547, 4
      %v2549 = vadd.f32 %v2547, %v2548
      %v2550 = vrot.slane %v2549, 2
      %v2551 = vadd.f32 %v2549, %v2550
      %v2552 = vrot.slane %v2551, 1
      %v2553 = vadd.f32 %v2551, %v2552
      %s2554 = vtos %v2553
      %v2555 = vmul.f32 %v2525, %v2525
      %v2556 = vmul.f32 %v2526, %v2526
      %v2557 = vmul.f32 %v2527, %v2527
      %v2558 = vmul.f32 %v2528, %v2528
      %v2559 = vmul.f32 %v2529, %v2529
      %v2560 = vmul.f32 %v2530, %v2530
      %v2561 = vmul.f32 %v2531, %v2531
      %v2562 = vsel %vm2532, %v2555, 0.0
      %v2563 = vsel %vm2532, %v2556, 0.0
      %v2564 = vadd.f32 %v2562, %v2563
      %v2565 = vsel %vm2532, %v2557, 0.0
      %v2566 = vadd.f32 %v2564, %v2565
      %v2567 = vsel %vm2532, %v2558, 0.0
      %v2568 = vadd.f32 %v2566, %v2567
      %v2569 = vsel %vm2532, %v2559, 0.0
      %v2570 = vadd.f32 %v2568, %v2569
      %v2571 = vsel %vm2532, %v2560, 0.0
      %v2572 = vadd.f32 %v2570, %v2571
      %v2573 = vsel %vm2532, %v2561, 0.0
      %v2574 = vadd.f32 %v2572, %v2573
      %2575 = vadd.xlane.f32.xlu0 %v2574
      %v2576 = vpop.xlane.xlu0 %2575
      %v2577 = vrot.slane %v2576, 4
      %v2578 = vadd.f32 %v2576, %v2577
      %v2579 = vrot.slane %v2578, 2
      %v2580 = vadd.f32 %v2578, %v2579
      %v2581 = vrot.slane %v2580, 1
      %v2582 = vadd.f32 %v2580, %v2581
      %s2583 = vtos %v2582
      %s2584 = smul.f32 %s2554, 0.00048828125
      %s2585 = smul.f32 %s2583, 0.00048828125
      %s2586 = smul.f32 %s2584, %s2584
      %s2587 = ssub.f32 %s2585, %s2586
      %s2588 = sadd.f32 %s2587, 1e-05
      %v2589 = vstv %s2588
      %v2590 = vrsqrt.pop %v2589
      %s2591 = vtos %v2590
      %v2592 = vld [vmem:[%s2] sm:$0xf]
      %v2593 = vstv %s2591
      %v2594 = vmul.f32 %v2592, %v2593
      %v2595 = vld [vmem:[%s3] sm:$0xf]
      %v2596 = vstv %s2584
      %v2597 = vmul.f32 %v2596, %v2594
      %v2598 = vsub.f32 %v2595, %v2597
      %2600 = vset.pattern.permute.xlu0 0
      %2601 = vperm.xlu0 %2600, %v2594
      %v2602 = vpop.permute.xlu0 %2601
      %v2604 = vmul.f32 %v2525, %v2602
      %v2605 = vmul.f32 %v2526, %v2602
      %v2606 = vmul.f32 %v2527, %v2602
      %v2607 = vmul.f32 %v2528, %v2602
      %v2608 = vmul.f32 %v2529, %v2602
      %v2609 = vmul.f32 %v2530, %v2602
      %v2610 = vmul.f32 %v2531, %v2602
      %2612 = vset.pattern.permute.xlu0 0
      %2613 = vperm.xlu0 %2612, %v2598
      %v2614 = vpop.permute.xlu0 %2613
      %v2616 = vadd.f32 %v2604, %v2614
      %v2617 = vadd.f32 %v2605, %v2614
      %v2618 = vadd.f32 %v2606, %v2614
      %v2619 = vadd.f32 %v2607, %v2614
      %v2620 = vadd.f32 %v2608, %v2614
      %v2621 = vadd.f32 %v2609, %v2614
      %v2622 = vadd.f32 %v2610, %v2614
      %v2623 = vmax.f32 %v2616, 0.0
      %v2624 = vmax.f32 %v2617, 0.0
      %v2625 = vmax.f32 %v2618, 0.0
      %v2626 = vmax.f32 %v2619, 0.0
      %v2627 = vmax.f32 %v2620, 0.0
      %v2628 = vmax.f32 %v2621, 0.0
      %v2629 = vmax.f32 %v2622, 0.0
      %2630 = vst [vmem:[%s224] sm:$0xf] %v2623
      %2631 = vst [vmem:[%s224 + $0x8] sm:$0xf] %v2624
      %2632 = vst [vmem:[%s224 + $0x10] sm:$0xf] %v2625
      %2633 = vst [vmem:[%s224 + $0x18] sm:$0xf] %v2626
      %2634 = vst [vmem:[%s224 + $0x20] sm:$0xf] %v2627
      %2635 = vst [vmem:[%s224 + $0x28] sm:$0xf] %v2628
      %2636 = vst [vmem:[%s224 + $0x30] sm:$0xf] %v2629
      %v2644 = vrot.slane %v2525, 4
      %v2645 = vrot.slane %v2526, 4
      %v2646 = vrot.slane %v2527, 4
      %v2647 = vrot.slane %v2528, 4
      %v2648 = vrot.slane %v2529, 4
      %v2649 = vrot.slane %v2530, 4
      %v2650 = vrot.slane %v2531, 4
      %v2658 = vsel %vm2532, %v2644, 0.0
      %v2659 = vsel %vm2532, %v2645, 0.0
      %v2660 = vadd.f32 %v2658, %v2659
      %v2661 = vsel %vm2532, %v2646, 0.0
      %v2662 = vadd.f32 %v2660, %v2661
      %v2663 = vsel %vm2532, %v2647, 0.0
      %v2664 = vadd.f32 %v2662, %v2663
      %v2665 = vsel %vm2532, %v2648, 0.0
      %v2666 = vadd.f32 %v2664, %v2665
      %v2667 = vsel %vm2532, %v2649, 0.0
      %v2668 = vadd.f32 %v2666, %v2667
      %v2669 = vsel %vm2532, %v2650, 0.0
      %v2670 = vadd.f32 %v2668, %v2669
      %2671 = vadd.xlane.f32.xlu0 %v2670
      %v2672 = vpop.xlane.xlu0 %2671
      %v2673 = vrot.slane %v2672, 4
      %v2674 = vadd.f32 %v2672, %v2673
      %v2675 = vrot.slane %v2674, 2
      %v2676 = vadd.f32 %v2674, %v2675
      %v2677 = vrot.slane %v2676, 1
      %v2678 = vadd.f32 %v2676, %v2677
      %s2679 = vtos %v2678
      %v2687 = vrot.slane %v2555, 4
      %v2688 = vrot.slane %v2556, 4
      %v2689 = vrot.slane %v2557, 4
      %v2690 = vrot.slane %v2558, 4
      %v2691 = vrot.slane %v2559, 4
      %v2692 = vrot.slane %v2560, 4
      %v2693 = vrot.slane %v2561, 4
      %v2701 = vsel %vm2532, %v2687, 0.0
      %v2702 = vsel %vm2532, %v2688, 0.0
      %v2703 = vadd.f32 %v2701, %v2702
      %v2704 = vsel %vm2532, %v2689, 0.0
      %v2705 = vadd.f32 %v2703, %v2704
      %v2706 = vsel %vm2532, %v2690, 0.0
      %v2707 = vadd.f32 %v2705, %v2706
      %v2708 = vsel %vm2532, %v2691, 0.0
      %v2709 = vadd.f32 %v2707, %v2708
      %v2710 = vsel %vm2532, %v2692, 0.0
      %v2711 = vadd.f32 %v2709, %v2710
      %v2712 = vsel %vm2532, %v2693, 0.0
      %v2713 = vadd.f32 %v2711, %v2712
      %2714 = vadd.xlane.f32.xlu0 %v2713
      %v2715 = vpop.xlane.xlu0 %2714
      %v2716 = vrot.slane %v2715, 4
      %v2717 = vadd.f32 %v2715, %v2716
      %v2718 = vrot.slane %v2717, 2
      %v2719 = vadd.f32 %v2717, %v2718
      %v2720 = vrot.slane %v2719, 1
      %v2721 = vadd.f32 %v2719, %v2720
      %s2722 = vtos %v2721
      %s2723 = smul.f32 %s2679, 0.00048828125
      %s2724 = smul.f32 %s2722, 0.00048828125
      %s2725 = smul.f32 %s2723, %s2723
      %s2726 = ssub.f32 %s2724, %s2725
      %s2727 = sadd.f32 %s2726, 1e-05
      %v2728 = vstv %s2727
      %v2729 = vrsqrt.pop %v2728
      %s2730 = vtos %v2729
      %v2731 = vld [vmem:[%s2 + $0x4] sm:$0xf]
      %v2732 = vstv %s2730
      %v2733 = vmul.f32 %v2731, %v2732
      %v2734 = vld [vmem:[%s3 + $0x4] sm:$0xf]
      %v2735 = vstv %s2723
      %v2736 = vmul.f32 %v2735, %v2733
      %v2737 = vsub.f32 %v2734, %v2736
      %2739 = vset.pattern.permute.xlu0 0
      %2740 = vperm.xlu0 %2739, %v2733
      %v2741 = vpop.permute.xlu0 %2740
      %v2742 = vrot.slane %v2741, 4
      %v2744 = vmul.f32 %v2525, %v2742
      %v2745 = vmul.f32 %v2526, %v2742
      %v2746 = vmul.f32 %v2527, %v2742
      %v2747 = vmul.f32 %v2528, %v2742
      %v2748 = vmul.f32 %v2529, %v2742
      %v2749 = vmul.f32 %v2530, %v2742
      %v2750 = vmul.f32 %v2531, %v2742
      %2752 = vset.pattern.permute.xlu0 0
      %2753 = vperm.xlu0 %2752, %v2737
      %v2754 = vpop.permute.xlu0 %2753
      %v2755 = vrot.slane %v2754, 4
      %v2757 = vadd.f32 %v2744, %v2755
      %v2758 = vadd.f32 %v2745, %v2755
      %v2759 = vadd.f32 %v2746, %v2755
      %v2760 = vadd.f32 %v2747, %v2755
      %v2761 = vadd.f32 %v2748, %v2755
      %v2762 = vadd.f32 %v2749, %v2755
      %v2763 = vadd.f32 %v2750, %v2755
      %v2764 = vmax.f32 %v2757, 0.0
      %v2765 = vmax.f32 %v2758, 0.0
      %v2766 = vmax.f32 %v2759, 0.0
      %v2767 = vmax.f32 %v2760, 0.0
      %v2768 = vmax.f32 %v2761, 0.0
      %v2769 = vmax.f32 %v2762, 0.0
      %v2770 = vmax.f32 %v2763, 0.0
      %2771 = vst [vmem:[%s224] sm:$0xf0] %v2764
      %2772 = vst [vmem:[%s224 + $0x8] sm:$0xf0] %v2765
      %2773 = vst [vmem:[%s224 + $0x10] sm:$0xf0] %v2766
      %2774 = vst [vmem:[%s224 + $0x18] sm:$0xf0] %v2767
      %2775 = vst [vmem:[%s224 + $0x20] sm:$0xf0] %v2768
      %2776 = vst [vmem:[%s224 + $0x28] sm:$0xf0] %v2769
      %2777 = vst [vmem:[%s224 + $0x30] sm:$0xf0] %v2770
      %p2778 = scmp.lt.s32.totalorder %s16, 1
      %s2779 = scalar_select %p2778, %s16, 1
      %s2780 = smul.addr %s2779, 7
      %s2781 = smul.addr %s2780, 8
      %s2782 = scalar_lea.vmem %s5, %s2781
      // Predicated region
      $region41: #{up_conv_forward.1} parent=39 // pred_check
        %p2783 = pneg %p144
      $region42: #{up_conv_forward.1} parent=39 // pred_check_branch
        %2785 = sbr.rel (%p2783) target = $region44
      $region43: #{up_conv_forward.1} parent=39 // pred_region
        _
      $region44: #{up_conv_forward.1} parent=39 // pred_fallthru
        _
    $region40: #{up_conv_forward.1} parent=5 // pred_fallthru
      _
    %p2786 = scmp.le.s32.totalorder 2, %s11
    // Predicated region
    $region45: #{up_conv_forward.1} parent=5 // pred_check
      %p2787 = pneg %p2786
    $region46: #{up_conv_forward.1} parent=5 // pred_check_branch
      %2789 = sbr.rel (%p2787) target = $region48
    $region47: #{up_conv_forward.1} parent=5 // pred_region
      %s2790 = ssub.s32 %s11, 2
      // Predicated region
      $region49: #{up_conv_forward.1} parent=47 // pred_check
        %p2791 = pneg %p150
      $region50: #{up_conv_forward.1} parent=47 // pred_check_branch
        %2793 = sbr.rel (%p2791) target = $region52
      $region51: #{up_conv_forward.1} parent=47 // pred_region
        %p2794 = scmp.lt.s32.totalorder %s17, 1
        %s2795 = scalar_select %p2794, %s17, 1
        %s2796 = smul.addr %s2795, 7
        %s2797 = smul.addr %s2796, 8
        %s2798 = scalar_lea.vmem %s5, %s2797
      $region52: #{up_conv_forward.1} parent=47 // pred_fallthru
        _
    $region48: #{up_conv_forward.1} parent=5 // pred_fallthru
      _
  $region6: #{up_conv_forward.1} parent=0 // loop_footer
    %s15 = sadd.s32 1, %s11
  $region7: #{up_conv_forward.1} parent=0 // loop_footer_branch
    %10 = sbr.rel target = $region3
  $region8: #{up_conv_forward.1} parent=0 // loop_exit
    _

</llo_original>
